<compile_context>
chip_gen: v6e
topology: v6e:2x2x1
jax: 0.10.0
libtpu: 0.0.40
codegen_flags: <defaults>
</compile_context>

<pallas_src>
import math
from functools import partial

import jax
import jax.numpy as jnp
from jax.experimental import pallas as pl
from jax.experimental.pallas import tpu as pltpu


# ----------------------------- config ---------------------------------------

def find_multiple(n: int, k: int) -> int:
    if n % k == 0:
        return n
    return n + k - n % k


class Cfg:
    block_size = 32
    vocab_size = 64
    n_layer = 2
    n_head = 4
    dim = 64
    n_local_heads = 2          # GQA: n_head // n_local_heads = 2
    rope_base = 40000.0
    norm_eps = 1e-5
    heavy_const = 16           # length of the GPU-resident KV cache window
    heavy_channel_num = 8      # only used by the (skipped) label path

    def __init__(self):
        hidden_dim = 4 * self.dim
        self.intermediate_size = find_multiple(int(2 * hidden_dim / 3), 256)
        self.head_dim = self.dim // self.n_head


# ----------------------------- fused Pallas kernel ---------------------------

def _fused_kernel(x_ref, cos_ref, sin_ref,
                  wqkv_ref, wo_ref, anorm_ref, fnorm_ref, w13_ref, w2_ref,
                  normw_ref, outw_ref,
                  logits_ref,
                  x_res,
                  *, n_head, n_local_heads, head_dim, dim, kv_size,
                  inter, eps, scale):
    """One (batch b, layer l) grid step of the whole transformer."""
    l = pl.program_id(1)
    S = x_ref.shape[0]

    @pl.when(l == 0)
    def _():
        x_res[...] = x_ref[...]            # load embeddings into the residual stream

    def rms(v, w):                          # f32 RMSNorm
        ms = jnp.mean(v * v, axis=-1, keepdims=True)
        return v * jax.lax.rsqrt(ms + eps) * w

    x = x_res[...]                          # (S, dim) f32 residual stream

    # ---------------- attention ----------------
    xn = rms(x, anorm_ref[0]).astype(jnp.bfloat16)
    qkv = jnp.dot(xn, wqkv_ref[0], preferred_element_type=jnp.float32)
    # fused QKV column layout: [ q | q_rot | k | k_rot | v ]
    q  = qkv[:, 0:dim]
    qr = qkv[:, dim:2 * dim]
    k  = qkv[:, 2 * dim:2 * dim + kv_size]
    kr = qkv[:, 2 * dim + kv_size:2 * dim + 2 * kv_size]
    v  = qkv[:, 2 * dim + 2 * kv_size:2 * dim + 3 * kv_size]

    cos = cos_ref[...]
    sin = sin_ref[...]
    q = q * cos + qr * sin                              # interleaved-pair RoPE
    k = k * cos[:, :kv_size] + kr * sin[:, :kv_size]

    # causal mask == attn_mask[input_pos][:, input_pos] for prefill-from-0
    row = jax.lax.broadcasted_iota(jnp.int32, (S, S), 0)
    col = jax.lax.broadcasted_iota(jnp.int32, (S, S), 1)
    causal = jnp.where(col <= row, 0.0, -jnp.inf).astype(jnp.float32)

    rep = n_head // n_local_heads
    q_bf = q.astype(jnp.bfloat16)
    k_bf = k.astype(jnp.bfloat16)
    v_bf = v.astype(jnp.bfloat16)

    contract_last = (((1,), (1,)), ((), ()))            # q·kᵀ without transpose
    y_heads = []
    for h in range(n_head):                             # static unroll (tiny)
        g = h // rep                                    # GQA group of this head
        qh = q_bf[:, h * head_dim:(h + 1) * head_dim]
        kg = k_bf[:, g * head_dim:(g + 1) * head_dim]
        vg = v_bf[:, g * head_dim:(g + 1) * head_dim]
        s = jax.lax.dot_general(qh, kg, contract_last,
                                preferred_element_type=jnp.float32) * scale
        s = s + causal
        s = s - jnp.max(s, axis=-1, keepdims=True)
        p = jnp.exp(s)                                  # f32 softmax
        p = p * pl.reciprocal(jnp.sum(p, axis=-1, keepdims=True), approx=True)
        y_heads.append(jnp.dot(p.astype(jnp.bfloat16), vg,
                               preferred_element_type=jnp.float32))
    y = jnp.concatenate(y_heads, axis=-1).astype(jnp.bfloat16)   # (S, dim)
    attn_out = jnp.dot(y, wo_ref[0], preferred_element_type=jnp.float32)
    h1 = x + attn_out

    # ---------------- feed-forward (SwiGLU) ----------------
    hn = rms(h1, fnorm_ref[0]).astype(jnp.bfloat16)
    h13 = jnp.dot(hn, w13_ref[0], preferred_element_type=jnp.float32)
    a = h13[:, :inter]
    b = h13[:, inter:]
    gsw = (a * jax.nn.sigmoid(a)) * b                   # silu(w1 x) * (w3 x)
    ffn = jnp.dot(gsw.astype(jnp.bfloat16), w2_ref[0],
                  preferred_element_type=jnp.float32)
    x_new = h1 + ffn
    x_res[...] = x_new

    # ---------------- final norm + output projection ----------------
    @pl.when(l == pl.num_programs(1) - 1)
    def _():
        xf = rms(x_new, normw_ref[...]).astype(jnp.bfloat16)
        logits_ref[...] = jnp.dot(xf, outw_ref[...],
                                  preferred_element_type=jnp.float32)


# ----------------------------- JAX glue --------------------------------------

def precompute_freqs_cis(seq_len, n_elem, base):
    freqs = 1.0 / base ** (jnp.arange(0, n_elem, 2)[: n_elem // 2]
                           .astype(jnp.float32) / n_elem)
    t = jnp.arange(seq_len, dtype=jnp.float32)
    freqs = jnp.outer(t, freqs)
    cache = jnp.stack([jnp.cos(freqs), jnp.sin(freqs)], axis=-1)
    return cache.astype(jnp.bfloat16)           # matches torch bf16 cache


def rope_tables(freqs_cis, input_pos, cfg):
    """Expand (S, hd//2, 2) cos/sin to pair-duplicated, head-tiled (S, dim)."""
    fc = freqs_cis[input_pos].astype(jnp.float32)
    cos = jnp.repeat(fc[..., 0], 2, axis=-1)            # (S, hd): c0,c0,c1,c1,...
    sin = jnp.repeat(fc[..., 1], 2, axis=-1)
    cos = jnp.tile(cos, (1, cfg.n_head))                # (S, dim)
    sin = jnp.tile(sin, (1, cfg.n_head))
    return cos, sin


def transformer_forward(packed, idx, input_pos, cfg):
    B, S = idx.shape
    D, I = cfg.dim, cfg.intermediate_size
    kv = cfg.n_local_heads * cfg.head_dim
    L = cfg.n_layer
    assert S % 8 == 0 and S <= cfg.heavy_const and S <= cfg.block_size
    vocab_pad = packed['outw_pad'].shape[1]
    qkv_w = packed['wqkv_s']

    x = packed['tok_embeddings'][idx].reshape(B * S, D)          # f32
    cos_f, sin_f = rope_tables(packed['freqs_cis'], input_pos, cfg)

    kernel = partial(
        _fused_kernel,
        n_head=cfg.n_head, n_local_heads=cfg.n_local_heads,
        head_dim=cfg.head_dim, dim=D, kv_size=kv, inter=I,
        eps=cfg.norm_eps, scale=1.0 / math.sqrt(cfg.head_dim))

    logits_pad = pl.pallas_call(
        kernel,
        out_shape=jax.ShapeDtypeStruct((B * S, vocab_pad), jnp.float32),
        grid_spec=pltpu.PrefetchScalarGridSpec(
            num_scalar_prefetch=0,
            grid=(B, L),                                   # batch (parallel), layer (sequential)
            in_specs=[
                pl.BlockSpec((S, D), lambda b, l: (b, 0)),                 # token embeddings
                pl.BlockSpec((S, D), lambda b, l: (0, 0)),                 # cos
                pl.BlockSpec((S, D), lambda b, l: (0, 0)),                 # sin
                pl.BlockSpec((1, D, qkv_w.shape[-1]), lambda b, l: (l, 0, 0)),  # fused wqkv
                pl.BlockSpec((1, D, D), lambda b, l: (l, 0, 0)),           # wo
                pl.BlockSpec((1, 1, D), lambda b, l: (l, 0, 0)),           # attn norm w
                pl.BlockSpec((1, 1, D), lambda b, l: (l, 0, 0)),           # ffn norm w
                pl.BlockSpec((1, D, 2 * I), lambda b, l: (l, 0, 0)),       # w1|w3
                pl.BlockSpec((1, I, D), lambda b, l: (l, 0, 0)),           # w2
                pl.BlockSpec((1, D), lambda b, l: (0, 0)),                 # final norm w
                pl.BlockSpec((D, vocab_pad), lambda b, l: (0, 0)),         # output w (padded)
            ],
            out_specs=pl.BlockSpec((S, vocab_pad), lambda b, l: (b, 0)),
            scratch_shapes=[pltpu.VMEM((S, D), jnp.float32)],              # residual stream
        ),
        compiler_params=pltpu.CompilerParams(
            dimension_semantics=("parallel", "arbitrary")),
    )(x, cos_f, sin_f,
      packed['wqkv_s'], packed['wo_s'], packed['anorm_s'], packed['fnorm_s'],
      packed['w13_s'], packed['w2_s'], packed['norm_w'], packed['outw_pad'])

    return logits_pad[:, :cfg.vocab_size].reshape(B, S, cfg.vocab_size)


# ----------------------------- params ----------------------------------------

def init_params(cfg, key):
    scale = 0.02

    def lin(k, fan_in, fan_out):
        # Stored already transposed: y = x @ W, W:(fan_in, fan_out).
        return scale * jax.random.normal(k, (fan_in, fan_out), jnp.float32)

    keys = jax.random.split(key, 2 + cfg.n_layer)
    total_head_dim = (cfg.n_head + 2 * cfg.n_local_heads + cfg.n_head) * cfg.head_dim

    params = {
        'tok_embeddings': scale * jax.random.normal(
            keys[0], (cfg.vocab_size, cfg.dim), jnp.float32),
        'norm_w': jnp.ones((1, cfg.dim), jnp.float32),
        'output_w': lin(keys[1], cfg.dim, cfg.vocab_size),
    }
    layers = []
    for i in range(cfg.n_layer):
        lk = jax.random.split(keys[2 + i], 5)
        layers.append(dict(
            wqkv=lin(lk[0], cfg.dim, total_head_dim),
            wo=lin(lk[1], cfg.dim, cfg.dim),
            w1=lin(lk[2], cfg.dim, cfg.intermediate_size),
            w3=lin(lk[3], cfg.dim, cfg.intermediate_size),
            w2=lin(lk[4], cfg.intermediate_size, cfg.dim),
            attn_norm_w=jnp.ones((1, cfg.dim), jnp.float32),
            ffn_norm_w=jnp.ones((1, cfg.dim), jnp.float32),
        ))
    params['layers'] = layers
    params['freqs_cis'] = precompute_freqs_cis(cfg.block_size, cfg.head_dim,
                                               cfg.rope_base)
    return params


def _pair_rot(width):
    """R such that (x @ R)[2i] = -x[2i+1], (x @ R)[2i+1] = x[2i]."""
    i = jnp.arange(0, width, 2)
    R = jnp.zeros((width, width), jnp.float32)
    R = R.at[i + 1, i].set(-1.0)
    R = R.at[i, i + 1].set(1.0)
    return R


def pack_params(params, cfg):
    """Stack per-layer weights on a leading axis, fold the RoPE partner
    rotation into extra QKV columns, concat w1|w3, pad output to 128 lanes,
    and cast matmul weights to bf16 for the MXU."""
    D, kv = cfg.dim, cfg.n_local_heads * cfg.head_dim
    Rq, Rk = _pair_rot(D), _pair_rot(kv)

    wqkv_l, wo_l, w13_l, w2_l, an_l, fn_l = [], [], [], [], [], []
    for lp in params['layers']:
        wqkv = lp['wqkv']
        wq, wk, wv = wqkv[:, :D], wqkv[:, D:D + kv], wqkv[:, D + kv:D + 2 * kv]
        # next_q columns (wqkv[:, D+2*kv:]) feed only the sparse offloading path.
        wqkv_l.append(jnp.concatenate([wq, wq @ Rq, wk, wk @ Rk, wv], axis=1))
        wo_l.append(lp['wo'])
        w13_l.append(jnp.concatenate([lp['w1'], lp['w3']], axis=1))
        w2_l.append(lp['w2'])
        an_l.append(lp['attn_norm_w'])
        fn_l.append(lp['ffn_norm_w'])

    vocab_pad = find_multiple(cfg.vocab_size, 128)
    outw_pad = jnp.zeros((D, vocab_pad), jnp.float32)
    outw_pad = outw_pad.at[:, :cfg.vocab_size].set(params['output_w'])

    return dict(
        tok_embeddings=params['tok_embeddings'],
        freqs_cis=params['freqs_cis'],
        norm_w=params['norm_w'],
        outw_pad=outw_pad.astype(jnp.bfloat16),
        wqkv_s=jnp.stack(wqkv_l).astype(jnp.bfloat16),   # (L, D, 2D+3kv)
        wo_s=jnp.stack(wo_l).astype(jnp.bfloat16),       # (L, D, D)
        w13_s=jnp.stack(w13_l).astype(jnp.bfloat16),     # (L, D, 2I)
        w2_s=jnp.stack(w2_l).astype(jnp.bfloat16),       # (L, I, D)
        anorm_s=jnp.stack(an_l),                         # (L, 1, D) f32
        fnorm_s=jnp.stack(fn_l),                         # (L, 1, D) f32
    )


# ----------------------------- main -------------------------------------------

if __name__ == "__main__":
    cfg = Cfg()
    key = jax.random.PRNGKey(0)
    pkey, ikey = jax.random.split(key)
    params = init_params(cfg, pkey)
    packed = pack_params(params, cfg)

    B, S = 2, 8
    idx = jax.random.randint(ikey, (B, S), 0, cfg.vocab_size, dtype=jnp.int32)
    input_pos = jnp.arange(S, dtype=jnp.int32)   # dense prefill from position 0

    @jax.jit
    def fwd(packed, idx, input_pos):
        return transformer_forward(packed, idx, input_pos, cfg)

    logits = fwd(packed, idx, input_pos)
    jax.block_until_ready(logits)
    assert logits.shape == (B, S, cfg.vocab_size)
    assert logits.dtype == jnp.float32
    print("KERNEL_OK")
</pallas_src>

<mosaic_0001>
module attributes {stable_mosaic.version = 11 : i64} {
  func.func @_fused_kernel(%arg0: i32, %arg1: i32, %arg2: memref<8x64xf32, #tpu.memory_space<vmem>>, %arg3: memref<8x64xf32, #tpu.memory_space<vmem>>, %arg4: memref<8x64xf32, #tpu.memory_space<vmem>>, %arg5: memref<1x64x224xbf16, #tpu.memory_space<vmem>>, %arg6: memref<1x64x64xbf16, #tpu.memory_space<vmem>>, %arg7: memref<1x1x64xf32, #tpu.memory_space<vmem>>, %arg8: memref<1x1x64xf32, #tpu.memory_space<vmem>>, %arg9: memref<1x64x512xbf16, #tpu.memory_space<vmem>>, %arg10: memref<1x256x64xbf16, #tpu.memory_space<vmem>>, %arg11: memref<1x64xf32, #tpu.memory_space<vmem>>, %arg12: memref<64x128xbf16, #tpu.memory_space<vmem>>, %arg13: memref<8x128xf32, #tpu.memory_space<vmem>>, %arg14: memref<8x64xf32, #tpu.memory_space<vmem>>) attributes {dimension_semantics = [#tpu.dimension_semantics<parallel>, #tpu.dimension_semantics<arbitrary>], iteration_bounds = array<i64: 2, 2>, scalar_prefetch = 0 : i64, scratch_operands = 1 : i64, tpu.core_type = #tpu.core_type<tc>, window_params = [{transform_indices = @transform_0, window_bounds = array<i64: 8, 64>}, {pipeline_mode = #tpu.pipeline_mode<synchronous>, transform_indices = @transform_1, window_bounds = array<i64: 8, 64>}, {pipeline_mode = #tpu.pipeline_mode<synchronous>, transform_indices = @transform_2, window_bounds = array<i64: 8, 64>}, {transform_indices = @transform_3, window_bounds = array<i64: 1, 64, 224>}, {transform_indices = @transform_4, window_bounds = array<i64: 1, 64, 64>}, {transform_indices = @transform_5, window_bounds = array<i64: 1, 1, 64>}, {transform_indices = @transform_6, window_bounds = array<i64: 1, 1, 64>}, {transform_indices = @transform_7, window_bounds = array<i64: 1, 64, 512>}, {transform_indices = @transform_8, window_bounds = array<i64: 1, 256, 64>}, {pipeline_mode = #tpu.pipeline_mode<synchronous>, transform_indices = @transform_9, window_bounds = array<i64: 1, 64>}, {pipeline_mode = #tpu.pipeline_mode<synchronous>, transform_indices = @transform_10, window_bounds = array<i64: 64, 128>}, {transform_indices = @transform_11, window_bounds = array<i64: 8, 128>}]} {
    %c0_i32 = arith.constant 0 : i32
    %0 = arith.cmpi eq, %arg1, %c0_i32 : i32
    %1 = arith.extui %0 : i1 to i32
    %c0_i32_0 = arith.constant 0 : i32
    %2 = arith.cmpi ne, %1, %c0_i32_0 : i32
    scf.if %2 {
      %c0_59 = arith.constant 0 : index
      %c0_60 = arith.constant 0 : index
      %164 = vector.load %arg2[%c0_59, %c0_60] : memref<8x64xf32, #tpu.memory_space<vmem>>, vector<8x64xf32>
      %c0_61 = arith.constant 0 : index
      %c0_62 = arith.constant 0 : index
      %165 = vector.load %arg14[%c0_61, %c0_62] : memref<8x64xf32, #tpu.memory_space<vmem>>, vector<8x64xf32>
      tpu.vector_store %arg14[%c0_61, %c0_62], %164 {strides = array<i32>} : memref<8x64xf32, #tpu.memory_space<vmem>>, vector<8x64xf32>,
    } else {
    }
    %c0 = arith.constant 0 : index
    %c0_1 = arith.constant 0 : index
    %3 = vector.load %arg14[%c0, %c0_1] : memref<8x64xf32, #tpu.memory_space<vmem>>, vector<8x64xf32>
    %c0_2 = arith.constant 0 : index
    %c0_3 = arith.constant 0 : index
    %c0_4 = arith.constant 0 : index
    %4 = vector.load %arg7[%c0_2, %c0_3, %c0_4] : memref<1x1x64xf32, #tpu.memory_space<vmem>>, vector<1x1x64xf32>
    %5 = vector.shape_cast %4 : vector<1x1x64xf32> to vector<1x64xf32>
    %6 = arith.mulf %3, %3 : vector<8x64xf32>
    %cst = arith.constant dense<0.000000e+00> : vector<8xf32>
    %7 = vector.multi_reduction <add>, %6, %cst [1] : vector<8x64xf32> to vector<8xf32>
    %8 = vector.shape_cast %7 : vector<8xf32> to vector<8x1xf32>
    %cst_5 = arith.constant 6.400000e+01 : f32
    %9 = vector.broadcast %cst_5 : f32 to vector<8x1xf32>
    %10 = arith.divf %8, %9 : vector<8x1xf32>
    %cst_6 = arith.constant 9.99999974E-6 : f32
    %11 = vector.broadcast %cst_6 : f32 to vector<8x1xf32>
    %12 = arith.addf %10, %11 : vector<8x1xf32>
    %13 = math.rsqrt %12 : vector<8x1xf32>
    %14 = vector.broadcast %13 : vector<8x1xf32> to vector<8x64xf32>
    %15 = arith.mulf %3, %14 : vector<8x64xf32>
    %16 = vector.broadcast %5 : vector<1x64xf32> to vector<8x64xf32>
    %17 = arith.mulf %15, %16 : vector<8x64xf32>
    %18 = arith.truncf %17 : vector<8x64xf32> to vector<8x64xbf16>
    %c0_7 = arith.constant 0 : index
    %c0_8 = arith.constant 0 : index
    %c0_9 = arith.constant 0 : index
    %19 = vector.load %arg5[%c0_7, %c0_8, %c0_9] : memref<1x64x224xbf16, #tpu.memory_space<vmem>>, vector<1x64x224xbf16>
    %20 = vector.shape_cast %19 : vector<1x64x224xbf16> to vector<64x224xbf16>
    %cst_10 = arith.constant dense<0.000000e+00> : vector<8x224xf32>
    %21 = tpu.matmul %18, %20, %cst_10 {dimension_numbers = #tpu.dot_dimension_numbers<[1], [0], [0], [1], [0, 0, 1, 1], [], []>} : vector<8x64xbf16>, vector<64x224xbf16>, vector<8x224xf32> -> vector<8x224xf32>
    %22 = vector.extract_strided_slice %21 {offsets = [0, 0], sizes = [8, 64], strides = [1, 1]} : vector<8x224xf32> to vector<8x64xf32>
    %23 = vector.extract_strided_slice %21 {offsets = [0, 64], sizes = [8, 64], strides = [1, 1]} : vector<8x224xf32> to vector<8x64xf32>
    %24 = vector.extract_strided_slice %21 {offsets = [0, 128], sizes = [8, 32], strides = [1, 1]} : vector<8x224xf32> to vector<8x32xf32>
    %25 = vector.extract_strided_slice %21 {offsets = [0, 160], sizes = [8, 32], strides = [1, 1]} : vector<8x224xf32> to vector<8x32xf32>
    %26 = vector.extract_strided_slice %21 {offsets = [0, 192], sizes = [8, 32], strides = [1, 1]} : vector<8x224xf32> to vector<8x32xf32>
    %c0_11 = arith.constant 0 : index
    %c0_12 = arith.constant 0 : index
    %27 = vector.load %arg3[%c0_11, %c0_12] : memref<8x64xf32, #tpu.memory_space<vmem>>, vector<8x64xf32>
    %c0_13 = arith.constant 0 : index
    %c0_14 = arith.constant 0 : index
    %28 = vector.load %arg4[%c0_13, %c0_14] : memref<8x64xf32, #tpu.memory_space<vmem>>, vector<8x64xf32>
    %29 = arith.mulf %22, %27 : vector<8x64xf32>
    %30 = arith.mulf %23, %28 : vector<8x64xf32>
    %31 = arith.addf %29, %30 : vector<8x64xf32>
    %32 = vector.extract_strided_slice %27 {offsets = [0, 0], sizes = [8, 32], strides = [1, 1]} : vector<8x64xf32> to vector<8x32xf32>
    %33 = arith.mulf %24, %32 : vector<8x32xf32>
    %34 = vector.extract_strided_slice %28 {offsets = [0, 0], sizes = [8, 32], strides = [1, 1]} : vector<8x64xf32> to vector<8x32xf32>
    %35 = arith.mulf %25, %34 : vector<8x32xf32>
    %36 = arith.addf %33, %35 : vector<8x32xf32>
    %37 = tpu.iota {dimensions = array<i32: 0>} : vector<8x8xi32>
    %38 = tpu.iota {dimensions = array<i32: 1>} : vector<8x8xi32>
    %39 = arith.cmpi sle, %38, %37 : vector<8x8xi32>
    %cst_15 = arith.constant 0.000000e+00 : f32
    %cst_16 = arith.constant 0xFF800000 : f32
    %40 = vector.broadcast %cst_15 : f32 to vector<8x8xf32>
    %41 = vector.broadcast %cst_16 : f32 to vector<8x8xf32>
    %42 = arith.select %39, %40, %41 : vector<8x8xi1>, vector<8x8xf32>
    %43 = arith.truncf %31 : vector<8x64xf32> to vector<8x64xbf16>
    %44 = arith.truncf %36 : vector<8x32xf32> to vector<8x32xbf16>
    %45 = arith.truncf %26 : vector<8x32xf32> to vector<8x32xbf16>
    %46 = vector.extract_strided_slice %43 {offsets = [0, 0], sizes = [8, 16], strides = [1, 1]} : vector<8x64xbf16> to vector<8x16xbf16>
    %47 = vector.extract_strided_slice %44 {offsets = [0, 0], sizes = [8, 16], strides = [1, 1]} : vector<8x32xbf16> to vector<8x16xbf16>
    %48 = vector.extract_strided_slice %45 {offsets = [0, 0], sizes = [8, 16], strides = [1, 1]} : vector<8x32xbf16> to vector<8x16xbf16>
    %cst_17 = arith.constant dense<0.000000e+00> : vector<8x8xf32>
    %49 = tpu.matmul %46, %47, %cst_17 {dimension_numbers = #tpu.dot_dimension_numbers<[1], [1], [0], [0], [0, 0, 1, 0], [], []>} : vector<8x16xbf16>, vector<8x16xbf16>, vector<8x8xf32> -> vector<8x8xf32>
    %cst_18 = arith.constant 2.500000e-01 : f32
    %50 = vector.broadcast %cst_18 : f32 to vector<8x8xf32>
    %51 = arith.mulf %49, %50 : vector<8x8xf32>
    %52 = arith.addf %51, %42 : vector<8x8xf32>
    %cst_19 = arith.constant dense<0xFF800000> : vector<8xf32>
    %53 = vector.multi_reduction <maximumf>, %52, %cst_19 [1] : vector<8x8xf32> to vector<8xf32>
    %54 = vector.shape_cast %53 : vector<8xf32> to vector<8x1xf32>
    %55 = vector.broadcast %54 : vector<8x1xf32> to vector<8x8xf32>
    %56 = arith.subf %52, %55 : vector<8x8xf32>
    %57 = math.exp %56 : vector<8x8xf32>
    %cst_20 = arith.constant dense<0.000000e+00> : vector<8xf32>
    %58 = vector.multi_reduction <add>, %57, %cst_20 [1] : vector<8x8xf32> to vector<8xf32>
    %59 = vector.shape_cast %58 : vector<8xf32> to vector<8x1xf32>
    %60 = tpu.reciprocal %59 {approx = true} : vector<8x1xf32> -> vector<8x1xf32>
    %61 = vector.broadcast %60 : vector<8x1xf32> to vector<8x8xf32>
    %62 = arith.mulf %57, %61 : vector<8x8xf32>
    %63 = arith.truncf %62 : vector<8x8xf32> to vector<8x8xbf16>
    %cst_21 = arith.constant dense<0.000000e+00> : vector<8x16xf32>
    %64 = tpu.matmul %63, %48, %cst_21 {dimension_numbers = #tpu.dot_dimension_numbers<[1], [0], [0], [1], [0, 0, 1, 1], [], []>} : vector<8x8xbf16>, vector<8x16xbf16>, vector<8x16xf32> -> vector<8x16xf32>
    %65 = vector.extract_strided_slice %43 {offsets = [0, 16], sizes = [8, 16], strides = [1, 1]} : vector<8x64xbf16> to vector<8x16xbf16>
    %66 = vector.extract_strided_slice %44 {offsets = [0, 0], sizes = [8, 16], strides = [1, 1]} : vector<8x32xbf16> to vector<8x16xbf16>
    %67 = vector.extract_strided_slice %45 {offsets = [0, 0], sizes = [8, 16], strides = [1, 1]} : vector<8x32xbf16> to vector<8x16xbf16>
    %cst_22 = arith.constant dense<0.000000e+00> : vector<8x8xf32>
    %68 = tpu.matmul %65, %66, %cst_22 {dimension_numbers = #tpu.dot_dimension_numbers<[1], [1], [0], [0], [0, 0, 1, 0], [], []>} : vector<8x16xbf16>, vector<8x16xbf16>, vector<8x8xf32> -> vector<8x8xf32>
    %cst_23 = arith.constant 2.500000e-01 : f32
    %69 = vector.broadcast %cst_23 : f32 to vector<8x8xf32>
    %70 = arith.mulf %68, %69 : vector<8x8xf32>
    %71 = arith.addf %70, %42 : vector<8x8xf32>
    %cst_24 = arith.constant dense<0xFF800000> : vector<8xf32>
    %72 = vector.multi_reduction <maximumf>, %71, %cst_24 [1] : vector<8x8xf32> to vector<8xf32>
    %73 = vector.shape_cast %72 : vector<8xf32> to vector<8x1xf32>
    %74 = vector.broadcast %73 : vector<8x1xf32> to vector<8x8xf32>
    %75 = arith.subf %71, %74 : vector<8x8xf32>
    %76 = math.exp %75 : vector<8x8xf32>
    %cst_25 = arith.constant dense<0.000000e+00> : vector<8xf32>
    %77 = vector.multi_reduction <add>, %76, %cst_25 [1] : vector<8x8xf32> to vector<8xf32>
    %78 = vector.shape_cast %77 : vector<8xf32> to vector<8x1xf32>
    %79 = tpu.reciprocal %78 {approx = true} : vector<8x1xf32> -> vector<8x1xf32>
    %80 = vector.broadcast %79 : vector<8x1xf32> to vector<8x8xf32>
    %81 = arith.mulf %76, %80 : vector<8x8xf32>
    %82 = arith.truncf %81 : vector<8x8xf32> to vector<8x8xbf16>
    %cst_26 = arith.constant dense<0.000000e+00> : vector<8x16xf32>
    %83 = tpu.matmul %82, %67, %cst_26 {dimension_numbers = #tpu.dot_dimension_numbers<[1], [0], [0], [1], [0, 0, 1, 1], [], []>} : vector<8x8xbf16>, vector<8x16xbf16>, vector<8x16xf32> -> vector<8x16xf32>
    %84 = vector.extract_strided_slice %43 {offsets = [0, 32], sizes = [8, 16], strides = [1, 1]} : vector<8x64xbf16> to vector<8x16xbf16>
    %85 = vector.extract_strided_slice %44 {offsets = [0, 16], sizes = [8, 16], strides = [1, 1]} : vector<8x32xbf16> to vector<8x16xbf16>
    %86 = vector.extract_strided_slice %45 {offsets = [0, 16], sizes = [8, 16], strides = [1, 1]} : vector<8x32xbf16> to vector<8x16xbf16>
    %cst_27 = arith.constant dense<0.000000e+00> : vector<8x8xf32>
    %87 = tpu.matmul %84, %85, %cst_27 {dimension_numbers = #tpu.dot_dimension_numbers<[1], [1], [0], [0], [0, 0, 1, 0], [], []>} : vector<8x16xbf16>, vector<8x16xbf16>, vector<8x8xf32> -> vector<8x8xf32>
    %cst_28 = arith.constant 2.500000e-01 : f32
    %88 = vector.broadcast %cst_28 : f32 to vector<8x8xf32>
    %89 = arith.mulf %87, %88 : vector<8x8xf32>
    %90 = arith.addf %89, %42 : vector<8x8xf32>
    %cst_29 = arith.constant dense<0xFF800000> : vector<8xf32>
    %91 = vector.multi_reduction <maximumf>, %90, %cst_29 [1] : vector<8x8xf32> to vector<8xf32>
    %92 = vector.shape_cast %91 : vector<8xf32> to vector<8x1xf32>
    %93 = vector.broadcast %92 : vector<8x1xf32> to vector<8x8xf32>
    %94 = arith.subf %90, %93 : vector<8x8xf32>
    %95 = math.exp %94 : vector<8x8xf32>
    %cst_30 = arith.constant dense<0.000000e+00> : vector<8xf32>
    %96 = vector.multi_reduction <add>, %95, %cst_30 [1] : vector<8x8xf32> to vector<8xf32>
    %97 = vector.shape_cast %96 : vector<8xf32> to vector<8x1xf32>
    %98 = tpu.reciprocal %97 {approx = true} : vector<8x1xf32> -> vector<8x1xf32>
    %99 = vector.broadcast %98 : vector<8x1xf32> to vector<8x8xf32>
    %100 = arith.mulf %95, %99 : vector<8x8xf32>
    %101 = arith.truncf %100 : vector<8x8xf32> to vector<8x8xbf16>
    %cst_31 = arith.constant dense<0.000000e+00> : vector<8x16xf32>
    %102 = tpu.matmul %101, %86, %cst_31 {dimension_numbers = #tpu.dot_dimension_numbers<[1], [0], [0], [1], [0, 0, 1, 1], [], []>} : vector<8x8xbf16>, vector<8x16xbf16>, vector<8x16xf32> -> vector<8x16xf32>
    %103 = vector.extract_strided_slice %43 {offsets = [0, 48], sizes = [8, 16], strides = [1, 1]} : vector<8x64xbf16> to vector<8x16xbf16>
    %104 = vector.extract_strided_slice %44 {offsets = [0, 16], sizes = [8, 16], strides = [1, 1]} : vector<8x32xbf16> to vector<8x16xbf16>
    %105 = vector.extract_strided_slice %45 {offsets = [0, 16], sizes = [8, 16], strides = [1, 1]} : vector<8x32xbf16> to vector<8x16xbf16>
    %cst_32 = arith.constant dense<0.000000e+00> : vector<8x8xf32>
    %106 = tpu.matmul %103, %104, %cst_32 {dimension_numbers = #tpu.dot_dimension_numbers<[1], [1], [0], [0], [0, 0, 1, 0], [], []>} : vector<8x16xbf16>, vector<8x16xbf16>, vector<8x8xf32> -> vector<8x8xf32>
    %cst_33 = arith.constant 2.500000e-01 : f32
    %107 = vector.broadcast %cst_33 : f32 to vector<8x8xf32>
    %108 = arith.mulf %106, %107 : vector<8x8xf32>
    %109 = arith.addf %108, %42 : vector<8x8xf32>
    %cst_34 = arith.constant dense<0xFF800000> : vector<8xf32>
    %110 = vector.multi_reduction <maximumf>, %109, %cst_34 [1] : vector<8x8xf32> to vector<8xf32>
    %111 = vector.shape_cast %110 : vector<8xf32> to vector<8x1xf32>
    %112 = vector.broadcast %111 : vector<8x1xf32> to vector<8x8xf32>
    %113 = arith.subf %109, %112 : vector<8x8xf32>
    %114 = math.exp %113 : vector<8x8xf32>
    %cst_35 = arith.constant dense<0.000000e+00> : vector<8xf32>
    %115 = vector.multi_reduction <add>, %114, %cst_35 [1] : vector<8x8xf32> to vector<8xf32>
    %116 = vector.shape_cast %115 : vector<8xf32> to vector<8x1xf32>
    %117 = tpu.reciprocal %116 {approx = true} : vector<8x1xf32> -> vector<8x1xf32>
    %118 = vector.broadcast %117 : vector<8x1xf32> to vector<8x8xf32>
    %119 = arith.mulf %114, %118 : vector<8x8xf32>
    %120 = arith.truncf %119 : vector<8x8xf32> to vector<8x8xbf16>
    %cst_36 = arith.constant dense<0.000000e+00> : vector<8x16xf32>
    %121 = tpu.matmul %120, %105, %cst_36 {dimension_numbers = #tpu.dot_dimension_numbers<[1], [0], [0], [1], [0, 0, 1, 1], [], []>} : vector<8x8xbf16>, vector<8x16xbf16>, vector<8x16xf32> -> vector<8x16xf32>
    %122 = tpu.concatenate %64, %83, %102, %121 in 1 : vector<8x16xf32>, vector<8x16xf32>, vector<8x16xf32>, vector<8x16xf32> -> vector<8x64xf32>
    %123 = arith.truncf %122 : vector<8x64xf32> to vector<8x64xbf16>
    %c0_37 = arith.constant 0 : index
    %c0_38 = arith.constant 0 : index
    %c0_39 = arith.constant 0 : index
    %124 = vector.load %arg6[%c0_37, %c0_38, %c0_39] : memref<1x64x64xbf16, #tpu.memory_space<vmem>>, vector<1x64x64xbf16>
    %125 = vector.shape_cast %124 : vector<1x64x64xbf16> to vector<64x64xbf16>
    %cst_40 = arith.constant dense<0.000000e+00> : vector<8x64xf32>
    %126 = tpu.matmul %123, %125, %cst_40 {dimension_numbers = #tpu.dot_dimension_numbers<[1], [0], [0], [1], [0, 0, 1, 1], [], []>} : vector<8x64xbf16>, vector<64x64xbf16>, vector<8x64xf32> -> vector<8x64xf32>
    %127 = arith.addf %3, %126 : vector<8x64xf32>
    %c0_41 = arith.constant 0 : index
    %c0_42 = arith.constant 0 : index
    %c0_43 = arith.constant 0 : index
    %128 = vector.load %arg8[%c0_41, %c0_42, %c0_43] : memref<1x1x64xf32, #tpu.memory_space<vmem>>, vector<1x1x64xf32>
    %129 = vector.shape_cast %128 : vector<1x1x64xf32> to vector<1x64xf32>
    %130 = arith.mulf %127, %127 : vector<8x64xf32>
    %cst_44 = arith.constant dense<0.000000e+00> : vector<8xf32>
    %131 = vector.multi_reduction <add>, %130, %cst_44 [1] : vector<8x64xf32> to vector<8xf32>
    %132 = vector.shape_cast %131 : vector<8xf32> to vector<8x1xf32>
    %cst_45 = arith.constant 6.400000e+01 : f32
    %133 = vector.broadcast %cst_45 : f32 to vector<8x1xf32>
    %134 = arith.divf %132, %133 : vector<8x1xf32>
    %cst_46 = arith.constant 9.99999974E-6 : f32
    %135 = vector.broadcast %cst_46 : f32 to vector<8x1xf32>
    %136 = arith.addf %134, %135 : vector<8x1xf32>
    %137 = math.rsqrt %136 : vector<8x1xf32>
    %138 = vector.broadcast %137 : vector<8x1xf32> to vector<8x64xf32>
    %139 = arith.mulf %127, %138 : vector<8x64xf32>
    %140 = vector.broadcast %129 : vector<1x64xf32> to vector<8x64xf32>
    %141 = arith.mulf %139, %140 : vector<8x64xf32>
    %142 = arith.truncf %141 : vector<8x64xf32> to vector<8x64xbf16>
    %c0_47 = arith.constant 0 : index
    %c0_48 = arith.constant 0 : index
    %c0_49 = arith.constant 0 : index
    %143 = vector.load %arg9[%c0_47, %c0_48, %c0_49] : memref<1x64x512xbf16, #tpu.memory_space<vmem>>, vector<1x64x512xbf16>
    %144 = vector.shape_cast %143 : vector<1x64x512xbf16> to vector<64x512xbf16>
    %cst_50 = arith.constant dense<0.000000e+00> : vector<8x512xf32>
    %145 = tpu.matmul %142, %144, %cst_50 {dimension_numbers = #tpu.dot_dimension_numbers<[1], [0], [0], [1], [0, 0, 1, 1], [], []>} : vector<8x64xbf16>, vector<64x512xbf16>, vector<8x512xf32> -> vector<8x512xf32>
    %146 = vector.extract_strided_slice %145 {offsets = [0, 0], sizes = [8, 256], strides = [1, 1]} : vector<8x512xf32> to vector<8x256xf32>
    %147 = vector.extract_strided_slice %145 {offsets = [0, 256], sizes = [8, 256], strides = [1, 1]} : vector<8x512xf32> to vector<8x256xf32>
    %148 = arith.negf %146 : vector<8x256xf32>
    %149 = math.exp %148 : vector<8x256xf32>
    %cst_51 = arith.constant 1.000000e+00 : f32
    %150 = vector.broadcast %cst_51 : f32 to vector<8x256xf32>
    %151 = arith.addf %150, %149 : vector<8x256xf32>
    %152 = arith.divf %150, %151 : vector<8x256xf32>
    %153 = arith.mulf %146, %152 : vector<8x256xf32>
    %154 = arith.mulf %153, %147 : vector<8x256xf32>
    %155 = arith.truncf %154 : vector<8x256xf32> to vector<8x256xbf16>
    %c0_52 = arith.constant 0 : index
    %c0_53 = arith.constant 0 : index
    %c0_54 = arith.constant 0 : index
    %156 = vector.load %arg10[%c0_52, %c0_53, %c0_54] : memref<1x256x64xbf16, #tpu.memory_space<vmem>>, vector<1x256x64xbf16>
    %157 = vector.shape_cast %156 : vector<1x256x64xbf16> to vector<256x64xbf16>
    %cst_55 = arith.constant dense<0.000000e+00> : vector<8x64xf32>
    %158 = tpu.matmul %155, %157, %cst_55 {dimension_numbers = #tpu.dot_dimension_numbers<[1], [0], [0], [1], [0, 0, 1, 1], [], []>} : vector<8x256xbf16>, vector<256x64xbf16>, vector<8x64xf32> -> vector<8x64xf32>
    %159 = arith.addf %127, %158 : vector<8x64xf32>
    %c0_56 = arith.constant 0 : index
    %c0_57 = arith.constant 0 : index
    %160 = vector.load %arg14[%c0_56, %c0_57] : memref<8x64xf32, #tpu.memory_space<vmem>>, vector<8x64xf32>
    tpu.vector_store %arg14[%c0_56, %c0_57], %159 {strides = array<i32>} : memref<8x64xf32, #tpu.memory_space<vmem>>, vector<8x64xf32>,
    %c1_i32 = arith.constant 1 : i32
    %161 = arith.cmpi eq, %arg1, %c1_i32 : i32
    %162 = arith.extui %161 : i1 to i32
    %c0_i32_58 = arith.constant 0 : i32
    %163 = arith.cmpi ne, %162, %c0_i32_58 : i32
    scf.if %163 {
      %c0_59 = arith.constant 0 : index
      %c0_60 = arith.constant 0 : index
      %164 = vector.load %arg11[%c0_59, %c0_60] : memref<1x64xf32, #tpu.memory_space<vmem>>, vector<1x64xf32>
      %165 = arith.mulf %159, %159 : vector<8x64xf32>
      %cst_61 = arith.constant dense<0.000000e+00> : vector<8xf32>
      %166 = vector.multi_reduction <add>, %165, %cst_61 [1] : vector<8x64xf32> to vector<8xf32>
      %167 = vector.shape_cast %166 : vector<8xf32> to vector<8x1xf32>
      %cst_62 = arith.constant 6.400000e+01 : f32
      %168 = vector.broadcast %cst_62 : f32 to vector<8x1xf32>
      %169 = arith.divf %167, %168 : vector<8x1xf32>
      %cst_63 = arith.constant 9.99999974E-6 : f32
      %170 = vector.broadcast %cst_63 : f32 to vector<8x1xf32>
      %171 = arith.addf %169, %170 : vector<8x1xf32>
      %172 = math.rsqrt %171 : vector<8x1xf32>
      %173 = vector.broadcast %172 : vector<8x1xf32> to vector<8x64xf32>
      %174 = arith.mulf %159, %173 : vector<8x64xf32>
      %175 = vector.broadcast %164 : vector<1x64xf32> to vector<8x64xf32>
      %176 = arith.mulf %174, %175 : vector<8x64xf32>
      %177 = arith.truncf %176 : vector<8x64xf32> to vector<8x64xbf16>
      %c0_64 = arith.constant 0 : index
      %c0_65 = arith.constant 0 : index
      %178 = vector.load %arg12[%c0_64, %c0_65] : memref<64x128xbf16, #tpu.memory_space<vmem>>, vector<64x128xbf16>
      %cst_66 = arith.constant dense<0.000000e+00> : vector<8x128xf32>
      %179 = tpu.matmul %177, %178, %cst_66 {dimension_numbers = #tpu.dot_dimension_numbers<[1], [0], [0], [1], [0, 0, 1, 1], [], []>} : vector<8x64xbf16>, vector<64x128xbf16>, vector<8x128xf32> -> vector<8x128xf32>
      %c0_67 = arith.constant 0 : index
      %c0_68 = arith.constant 0 : index
      %180 = vector.load %arg13[%c0_67, %c0_68] : memref<8x128xf32, #tpu.memory_space<vmem>>, vector<8x128xf32>
      tpu.vector_store %arg13[%c0_67, %c0_68], %179 {strides = array<i32>} : memref<8x128xf32, #tpu.memory_space<vmem>>, vector<8x128xf32>,
    } else {
    }
    return
  }
  func.func @transform_0(%arg0: i32, %arg1: i32) -> (i32, i32) {
    %c0_i32 = arith.constant 0 : i32
    %c0_i32_0 = arith.constant 0 : i32
    return %arg0, %c0_i32 : i32, i32
  }
  func.func @transform_1(%arg0: i32, %arg1: i32) -> (i32, i32) {
    %c0_i32 = arith.constant 0 : i32
    %c0_i32_0 = arith.constant 0 : i32
    %c0_i32_1 = arith.constant 0 : i32
    return %c0_i32, %c0_i32_0 : i32, i32
  }
  func.func @transform_2(%arg0: i32, %arg1: i32) -> (i32, i32) {
    %c0_i32 = arith.constant 0 : i32
    %c0_i32_0 = arith.constant 0 : i32
    %c0_i32_1 = arith.constant 0 : i32
    return %c0_i32, %c0_i32_0 : i32, i32
  }
  func.func @transform_3(%arg0: i32, %arg1: i32) -> (i32, i32, i32) {
    %c0_i32 = arith.constant 0 : i32
    %c0_i32_0 = arith.constant 0 : i32
    %c0_i32_1 = arith.constant 0 : i32
    return %arg1, %c0_i32, %c0_i32_0 : i32, i32, i32
  }
  func.func @transform_4(%arg0: i32, %arg1: i32) -> (i32, i32, i32) {
    %c0_i32 = arith.constant 0 : i32
    %c0_i32_0 = arith.constant 0 : i32
    %c0_i32_1 = arith.constant 0 : i32
    return %arg1, %c0_i32, %c0_i32_0 : i32, i32, i32
  }
  func.func @transform_5(%arg0: i32, %arg1: i32) -> (i32, i32, i32) {
    %c0_i32 = arith.constant 0 : i32
    %c0_i32_0 = arith.constant 0 : i32
    %c0_i32_1 = arith.constant 0 : i32
    return %arg1, %c0_i32, %c0_i32_0 : i32, i32, i32
  }
  func.func @transform_6(%arg0: i32, %arg1: i32) -> (i32, i32, i32) {
    %c0_i32 = arith.constant 0 : i32
    %c0_i32_0 = arith.constant 0 : i32
    %c0_i32_1 = arith.constant 0 : i32
    return %arg1, %c0_i32, %c0_i32_0 : i32, i32, i32
  }
  func.func @transform_7(%arg0: i32, %arg1: i32) -> (i32, i32, i32) {
    %c0_i32 = arith.constant 0 : i32
    %c0_i32_0 = arith.constant 0 : i32
    %c0_i32_1 = arith.constant 0 : i32
    return %arg1, %c0_i32, %c0_i32_0 : i32, i32, i32
  }
  func.func @transform_8(%arg0: i32, %arg1: i32) -> (i32, i32, i32) {
    %c0_i32 = arith.constant 0 : i32
    %c0_i32_0 = arith.constant 0 : i32
    %c0_i32_1 = arith.constant 0 : i32
    return %arg1, %c0_i32, %c0_i32_0 : i32, i32, i32
  }
  func.func @transform_9(%arg0: i32, %arg1: i32) -> (i32, i32) {
    %c0_i32 = arith.constant 0 : i32
    %c0_i32_0 = arith.constant 0 : i32
    %c0_i32_1 = arith.constant 0 : i32
    return %c0_i32, %c0_i32_0 : i32, i32
  }
  func.func @transform_10(%arg0: i32, %arg1: i32) -> (i32, i32) {
    %c0_i32 = arith.constant 0 : i32
    %c0_i32_0 = arith.constant 0 : i32
    %c0_i32_1 = arith.constant 0 : i32
    return %c0_i32, %c0_i32_0 : i32, i32
  }
  func.func @transform_11(%arg0: i32, %arg1: i32) -> (i32, i32) {
    %c0_i32 = arith.constant 0 : i32
    %c0_i32_0 = arith.constant 0 : i32
    return %arg0, %c0_i32 : i32, i32
  }
}

</mosaic_0001>

<llo_original>
// kernel: tile.15
$region0: #{tile.15}
  %s0 = inlined_call_operand.vmem [shape: f32[8,4,16], index: 0, kind: input, shape index: {}]
  %s1 = inlined_call_operand.vmem [shape: f32[8,64], index: 1, kind: output, shape index: {}]
  $region1: #{tile.15} parent=0
    #allocation0 [shape = 'u8[32768]{0}', space=vmem, size = 0x8000, scoped, tag = 'scoped mem for input reshape']
    %s3 = sshll.u32 1, 4
    %s4 = ssub.s32 %s3, 1
    %s5 = smul.addr 4, 7
    %s6 = scalar_lea.vmem %s0, %s5
    %v7 = vld [vmem:[%s6] sm:%s4]
    %s8 = scalar_lea.vmem [#allocation0], 56
    %9 = vst [vmem:[%s8] sm:%s4] %v7
    %s10 = smul.addr 4, 6
    %s11 = scalar_lea.vmem %s0, %s10
    %v12 = vld [vmem:[%s11] sm:%s4]
    %s13 = scalar_lea.vmem [#allocation0], 48
    %14 = vst [vmem:[%s13] sm:%s4] %v12
    %s15 = smul.addr 4, 5
    %s16 = scalar_lea.vmem %s0, %s15
    %v17 = vld [vmem:[%s16] sm:%s4]
    %s18 = scalar_lea.vmem [#allocation0], 40
    %19 = vst [vmem:[%s18] sm:%s4] %v17
    %s20 = smul.addr 4, 4
    %s21 = scalar_lea.vmem %s0, %s20
    %v22 = vld [vmem:[%s21] sm:%s4]
    %s23 = scalar_lea.vmem [#allocation0], 32
    %24 = vst [vmem:[%s23] sm:%s4] %v22
    %s25 = smul.addr 4, 3
    %s26 = scalar_lea.vmem %s0, %s25
    %v27 = vld [vmem:[%s26] sm:%s4]
    %s28 = scalar_lea.vmem [#allocation0], 24
    %29 = vst [vmem:[%s28] sm:%s4] %v27
    %s30 = smul.addr 4, 2
    %s31 = scalar_lea.vmem %s0, %s30
    %v32 = vld [vmem:[%s31] sm:%s4]
    %s33 = scalar_lea.vmem [#allocation0], 16
    %34 = vst [vmem:[%s33] sm:%s4] %v32
    %s35 = scalar_lea.vmem %s0, 4
    %v36 = vld [vmem:[%s35] sm:%s4]
    %s37 = scalar_lea.vmem [#allocation0], 8
    %38 = vst [vmem:[%s37] sm:%s4] %v36
    %v39 = vld [vmem:[%s0] sm:%s4]
    %40 = vst [vmem:[#allocation0] sm:%s4] %v39
    %v41 = vld [vmem:[#allocation0] ss:$8 sm:$0xf]
    %v42 = vld [vmem:[#allocation0] ss:$8 sm:$0xf0]
    %vm43 = vcmask 1047556
    %v44 = vsel %vm43, %v42, %v41
    %vm45 = vcmask 130048
    %46 = vst.msk [vmem:[%s1] sm:$0xff] %vm45, %v44
    %s47 = scalar_lea.vmem [#allocation0], 3
    %v48 = vld [vmem:[%s47] ss:$8 sm:$0xf]
    %s49 = scalar_lea.vmem [#allocation0], 3
    %v50 = vld [vmem:[%s49] ss:$8 sm:$0xf0]
    %vm51 = vcmask 1047556
    %v52 = vsel %vm51, %v50, %v48
    %53 = vrot.lane.b32.xlu0 %v52, 48
    %v54 = vpop.permute.xlu0 %53
    %vm55 = vcmask 523648
    %56 = vst.msk [vmem:[%s1] sm:$0xff] %vm55, %v54
    %s57 = scalar_lea.vmem [#allocation0], 2
    %v58 = vld [vmem:[%s57] ss:$8 sm:$0xf]
    %s59 = scalar_lea.vmem [#allocation0], 2
    %v60 = vld [vmem:[%s59] ss:$8 sm:$0xf0]
    %vm61 = vcmask 1047556
    %v62 = vsel %vm61, %v60, %v58
    %63 = vrot.lane.b32.xlu0 %v62, 32
    %v64 = vpop.permute.xlu0 %63
    %vm65 = vcmask 392448
    %66 = vst.msk [vmem:[%s1] sm:$0xff] %vm65, %v64
    %s67 = scalar_lea.vmem [#allocation0], 1
    %v68 = vld [vmem:[%s67] ss:$8 sm:$0xf]
    %s69 = scalar_lea.vmem [#allocation0], 1
    %v70 = vld [vmem:[%s69] ss:$8 sm:$0xf0]
    %vm71 = vcmask 1047556
    %v72 = vsel %vm71, %v70, %v68
    %73 = vrot.lane.b32.xlu0 %v72, 16
    %v74 = vpop.permute.xlu0 %73
    %vm75 = vcmask 261248
    %76 = vst.msk [vmem:[%s1] sm:$0xff] %vm75, %v74

// kernel: fwd.1
$region0: #{fwd.1}
  #allocation0 [shape = 'u32[]', space=smem, size = 0x4, offset = 0x4, fixed_abs, tag = 'smem constant byte address 0x4 - core index']
  #allocation1 [shape = 'u32[144,128]{1,0:T(1,128)}', space=vmem, size = 0x12000, scoped, tag = 'internal scratch']
  #allocation2 [shape = 'f32[8,64]{1,0:T(8,128)}', space=vmem, size = 0x1000, scoped, tag = 'scratch operand']
  %s0 = inlined_call_operand.vmem [shape: f32[16,64], index: 0, kind: input, shape index: {}]
  %s1 = inlined_call_operand.vmem [shape: f32[8,64], index: 1, kind: input, shape index: {}]
  %s2 = inlined_call_operand.vmem [shape: f32[8,64], index: 2, kind: input, shape index: {}]
  %s3 = inlined_call_operand.vmem [shape: bf16[2,64,224], index: 3, kind: input, shape index: {}]
  %s4 = inlined_call_operand.vmem [shape: bf16[2,64,64], index: 4, kind: input, shape index: {}]
  %s5 = inlined_call_operand.vmem [shape: f32[2,1,64], index: 5, kind: input, shape index: {}]
  %s6 = inlined_call_operand.vmem [shape: f32[2,1,64], index: 6, kind: input, shape index: {}]
  %s7 = inlined_call_operand.vmem [shape: bf16[2,64,512], index: 7, kind: input, shape index: {}]
  %s8 = inlined_call_operand.vmem [shape: bf16[2,256,64], index: 8, kind: input, shape index: {}]
  %s9 = inlined_call_operand.vmem [shape: f32[1,64], index: 9, kind: input, shape index: {}]
  %s10 = inlined_call_operand.vmem [shape: bf16[64,128], index: 10, kind: input, shape index: {}]
  %s11 = inlined_call_operand.vmem [shape: f32[16,128], index: 11, kind: output, shape index: {}]
  %s12 = sld [smem:[#allocation0]]
  $region85: #{fwd.1} parent=0
    _
  %s14 = ssub.s32 1, %s12
  %s15 = scalar_select 0, %s14, %s12
  loop: start=0, step=1, limit=6
  $region2: #{fwd.1} parent=0 // loop_pre_header
    _
  $region3: #{fwd.1} parent=0 // loop_header
    %s17 = sphi 0, %s21
    %p18 = scmp.ge.s32.totalorder %s17, 6
    %s24 = sphi 0, %s36
    %s25 = sphi 0, %s32
    %s26 = sphi 0, %s24
    %s27 = sphi 0, %s25
    %s28 = sphi 0, %s26
    %s29 = sphi 0, %s27
    %s39 = sphi 0, %s41
    %s42 = sphi 0, %s39
    %s43 = sphi 0, %s42
    %s59 = sphi 0, %s43
    %s63 = sphi 0, %s63
    %s65 = sphi 0, %s63
    %s66 = sphi 0, %s65
    %s80 = sphi 0, %s66
    %s84 = sphi 0, %s84
    %s86 = sphi 0, %s84
    %s87 = sphi 0, %s86
    %s101 = sphi 0, %s87
    %s107 = sphi 0, %s109
    %s110 = sphi 0, %s107
    %s111 = sphi 0, %s110
    %s127 = sphi 0, %s111
    %s133 = sphi 0, %s135
    %s136 = sphi 0, %s133
    %s137 = sphi 0, %s136
    %s153 = sphi 0, %s137
    %s159 = sphi 0, %s161
    %s162 = sphi 0, %s159
    %s163 = sphi 0, %s162
    %s179 = sphi 0, %s163
    %s185 = sphi 0, %s187
    %s188 = sphi 0, %s185
    %s189 = sphi 0, %s188
    %s205 = sphi 0, %s189
    %s211 = sphi 0, %s213
    %s214 = sphi 0, %s211
    %s215 = sphi 0, %s214
    %s231 = sphi 0, %s215
    %s237 = sphi 0, %s239
    %s240 = sphi 0, %s237
    %s241 = sphi 0, %s240
    %s257 = sphi 0, %s241
    %s261 = sphi 0, %s261
    %s263 = sphi 0, %s261
    %s264 = sphi 0, %s263
    %s278 = sphi 0, %s264
    %s282 = sphi 0, %s282
    %s284 = sphi 0, %s282
    %s285 = sphi 0, %s284
    %s299 = sphi 0, %s285
    %s305 = sphi 0, %s307
    %s308 = sphi 0, %s305
    %s309 = sphi 0, %s308
    %s325 = sphi 0, %s309
  $region4: #{fwd.1} parent=0 // loop_header_branch
    %20 = sbr.rel (%p18) target = $region8
  $region5: #{fwd.1} parent=0 // loop_body
    %s22 = ssub.s32 %s17, 1
    %s23 = ssub.s32 %s17, 2
    %s30 = sadd.s32 1, %s25
    %p31 = scmp.ge.s32.totalorder %s30, 2
    %s32 = scalar_select %p31, 0, %s30
    %s33 = sadd.s32 1, %s24
    %s34 = scalar_select %p31, %s33, %s24
    %p35 = scmp.ge.s32.totalorder %s34, 2
    %s36 = scalar_select %p35, 0, %s34
    %s37 = ssub.s32 %s24, %s36
    %p38 = scmp.eq.s32.totalorder %s37, 0
    %s40 = sadd.s32 %s39, 1
    %s41 = scalar_select %p38, %s39, %s40
    %p44 = pneg %p38
    %p45 = scmp.eq.s32.totalorder %s17, 3
    %p46 = por %p44, %p45
    %p47 = scmp.ne.s32.totalorder %s39, %s42
    %p48 = scmp.eq.s32.totalorder %s17, 0
    %p49 = por %p47, %p48
    %p50 = scmp.ne.s32.totalorder %s39, %s42
    %p51 = scmp.eq.s32.totalorder %s22, 3
    %p52 = por %p50, %p51
    %p53 = scmp.ne.s32.totalorder %s42, %s43
    %p54 = scmp.eq.s32.totalorder %s22, 0
    %p55 = por %p53, %p54
    %p56 = scmp.ne.s32.totalorder %s42, %s43
    %p57 = scmp.eq.s32.totalorder %s23, 3
    %p58 = por %p56, %p57
    %p60 = scmp.ne.s32.totalorder %s43, %s59
    %p61 = scmp.eq.s32.totalorder %s23, 0
    %p62 = por %p60, %p61
    %s64 = sadd.s32 %s63, 1
    %p67 = scmp.eq.s32.totalorder %s17, 3
    %p68 = scmp.ne.s32.totalorder %s63, %s65
    %p69 = scmp.eq.s32.totalorder %s17, 0
    %p70 = por %p68, %p69
    %p71 = scmp.ne.s32.totalorder %s63, %s65
    %p72 = scmp.eq.s32.totalorder %s22, 3
    %p73 = por %p71, %p72
    %p74 = scmp.ne.s32.totalorder %s65, %s66
    %p75 = scmp.eq.s32.totalorder %s22, 0
    %p76 = por %p74, %p75
    %p77 = scmp.ne.s32.totalorder %s65, %s66
    %p78 = scmp.eq.s32.totalorder %s23, 3
    %p79 = por %p77, %p78
    %p81 = scmp.ne.s32.totalorder %s66, %s80
    %p82 = scmp.eq.s32.totalorder %s23, 0
    %p83 = por %p81, %p82
    %s85 = sadd.s32 %s84, 1
    %p88 = scmp.eq.s32.totalorder %s17, 3
    %p89 = scmp.ne.s32.totalorder %s84, %s86
    %p90 = scmp.eq.s32.totalorder %s17, 0
    %p91 = por %p89, %p90
    %p92 = scmp.ne.s32.totalorder %s84, %s86
    %p93 = scmp.eq.s32.totalorder %s22, 3
    %p94 = por %p92, %p93
    %p95 = scmp.ne.s32.totalorder %s86, %s87
    %p96 = scmp.eq.s32.totalorder %s22, 0
    %p97 = por %p95, %p96
    %p98 = scmp.ne.s32.totalorder %s86, %s87
    %p99 = scmp.eq.s32.totalorder %s23, 3
    %p100 = por %p98, %p99
    %p102 = scmp.ne.s32.totalorder %s87, %s101
    %p103 = scmp.eq.s32.totalorder %s23, 0
    %p104 = por %p102, %p103
    %s105 = ssub.s32 %s25, %s32
    %p106 = scmp.eq.s32.totalorder %s105, 0
    %s108 = sadd.s32 %s107, 1
    %s109 = scalar_select %p106, %s107, %s108
    %p112 = pneg %p106
    %p113 = scmp.eq.s32.totalorder %s17, 3
    %p114 = por %p112, %p113
    %p115 = scmp.ne.s32.totalorder %s107, %s110
    %p116 = scmp.eq.s32.totalorder %s17, 0
    %p117 = por %p115, %p116
    %p118 = scmp.ne.s32.totalorder %s107, %s110
    %p119 = scmp.eq.s32.totalorder %s22, 3
    %p120 = por %p118, %p119
    %p121 = scmp.ne.s32.totalorder %s110, %s111
    %p122 = scmp.eq.s32.totalorder %s22, 0
    %p123 = por %p121, %p122
    %p124 = scmp.ne.s32.totalorder %s110, %s111
    %p125 = scmp.eq.s32.totalorder %s23, 3
    %p126 = por %p124, %p125
    %p128 = scmp.ne.s32.totalorder %s111, %s127
    %p129 = scmp.eq.s32.totalorder %s23, 0
    %p130 = por %p128, %p129
    %s131 = ssub.s32 %s25, %s32
    %p132 = scmp.eq.s32.totalorder %s131, 0
    %s134 = sadd.s32 %s133, 1
    %s135 = scalar_select %p132, %s133, %s134
    %p138 = pneg %p132
    %p139 = scmp.eq.s32.totalorder %s17, 3
    %p140 = por %p138, %p139
    %p141 = scmp.ne.s32.totalorder %s133, %s136
    %p142 = scmp.eq.s32.totalorder %s17, 0
    %p143 = por %p141, %p142
    %p144 = scmp.ne.s32.totalorder %s133, %s136
    %p145 = scmp.eq.s32.totalorder %s22, 3
    %p146 = por %p144, %p145
    %p147 = scmp.ne.s32.totalorder %s136, %s137
    %p148 = scmp.eq.s32.totalorder %s22, 0
    %p149 = por %p147, %p148
    %p150 = scmp.ne.s32.totalorder %s136, %s137
    %p151 = scmp.eq.s32.totalorder %s23, 3
    %p152 = por %p150, %p151
    %p154 = scmp.ne.s32.totalorder %s137, %s153
    %p155 = scmp.eq.s32.totalorder %s23, 0
    %p156 = por %p154, %p155
    %s157 = ssub.s32 %s25, %s32
    %p158 = scmp.eq.s32.totalorder %s157, 0
    %s160 = sadd.s32 %s159, 1
    %s161 = scalar_select %p158, %s159, %s160
    %p164 = pneg %p158
    %p165 = scmp.eq.s32.totalorder %s17, 3
    %p166 = por %p164, %p165
    %p167 = scmp.ne.s32.totalorder %s159, %s162
    %p168 = scmp.eq.s32.totalorder %s17, 0
    %p169 = por %p167, %p168
    %p170 = scmp.ne.s32.totalorder %s159, %s162
    %p171 = scmp.eq.s32.totalorder %s22, 3
    %p172 = por %p170, %p171
    %p173 = scmp.ne.s32.totalorder %s162, %s163
    %p174 = scmp.eq.s32.totalorder %s22, 0
    %p175 = por %p173, %p174
    %p176 = scmp.ne.s32.totalorder %s162, %s163
    %p177 = scmp.eq.s32.totalorder %s23, 3
    %p178 = por %p176, %p177
    %p180 = scmp.ne.s32.totalorder %s163, %s179
    %p181 = scmp.eq.s32.totalorder %s23, 0
    %p182 = por %p180, %p181
    %s183 = ssub.s32 %s25, %s32
    %p184 = scmp.eq.s32.totalorder %s183, 0
    %s186 = sadd.s32 %s185, 1
    %s187 = scalar_select %p184, %s185, %s186
    %p190 = pneg %p184
    %p191 = scmp.eq.s32.totalorder %s17, 3
    %p192 = por %p190, %p191
    %p193 = scmp.ne.s32.totalorder %s185, %s188
    %p194 = scmp.eq.s32.totalorder %s17, 0
    %p195 = por %p193, %p194
    %p196 = scmp.ne.s32.totalorder %s185, %s188
    %p197 = scmp.eq.s32.totalorder %s22, 3
    %p198 = por %p196, %p197
    %p199 = scmp.ne.s32.totalorder %s188, %s189
    %p200 = scmp.eq.s32.totalorder %s22, 0
    %p201 = por %p199, %p200
    %p202 = scmp.ne.s32.totalorder %s188, %s189
    %p203 = scmp.eq.s32.totalorder %s23, 3
    %p204 = por %p202, %p203
    %p206 = scmp.ne.s32.totalorder %s189, %s205
    %p207 = scmp.eq.s32.totalorder %s23, 0
    %p208 = por %p206, %p207
    %s209 = ssub.s32 %s25, %s32
    %p210 = scmp.eq.s32.totalorder %s209, 0
    %s212 = sadd.s32 %s211, 1
    %s213 = scalar_select %p210, %s211, %s212
    %p216 = pneg %p210
    %p217 = scmp.eq.s32.totalorder %s17, 3
    %p218 = por %p216, %p217
    %p219 = scmp.ne.s32.totalorder %s211, %s214
    %p220 = scmp.eq.s32.totalorder %s17, 0
    %p221 = por %p219, %p220
    %p222 = scmp.ne.s32.totalorder %s211, %s214
    %p223 = scmp.eq.s32.totalorder %s22, 3
    %p224 = por %p222, %p223
    %p225 = scmp.ne.s32.totalorder %s214, %s215
    %p226 = scmp.eq.s32.totalorder %s22, 0
    %p227 = por %p225, %p226
    %p228 = scmp.ne.s32.totalorder %s214, %s215
    %p229 = scmp.eq.s32.totalorder %s23, 3
    %p230 = por %p228, %p229
    %p232 = scmp.ne.s32.totalorder %s215, %s231
    %p233 = scmp.eq.s32.totalorder %s23, 0
    %p234 = por %p232, %p233
    %s235 = ssub.s32 %s25, %s32
    %p236 = scmp.eq.s32.totalorder %s235, 0
    %s238 = sadd.s32 %s237, 1
    %s239 = scalar_select %p236, %s237, %s238
    %p242 = pneg %p236
    %p243 = scmp.eq.s32.totalorder %s17, 3
    %p244 = por %p242, %p243
    %p245 = scmp.ne.s32.totalorder %s237, %s240
    %p246 = scmp.eq.s32.totalorder %s17, 0
    %p247 = por %p245, %p246
    %p248 = scmp.ne.s32.totalorder %s237, %s240
    %p249 = scmp.eq.s32.totalorder %s22, 3
    %p250 = por %p248, %p249
    %p251 = scmp.ne.s32.totalorder %s240, %s241
    %p252 = scmp.eq.s32.totalorder %s22, 0
    %p253 = por %p251, %p252
    %p254 = scmp.ne.s32.totalorder %s240, %s241
    %p255 = scmp.eq.s32.totalorder %s23, 3
    %p256 = por %p254, %p255
    %p258 = scmp.ne.s32.totalorder %s241, %s257
    %p259 = scmp.eq.s32.totalorder %s23, 0
    %p260 = por %p258, %p259
    %s262 = sadd.s32 %s261, 1
    %p265 = scmp.eq.s32.totalorder %s17, 3
    %p266 = scmp.ne.s32.totalorder %s261, %s263
    %p267 = scmp.eq.s32.totalorder %s17, 0
    %p268 = por %p266, %p267
    %p269 = scmp.ne.s32.totalorder %s261, %s263
    %p270 = scmp.eq.s32.totalorder %s22, 3
    %p271 = por %p269, %p270
    %p272 = scmp.ne.s32.totalorder %s263, %s264
    %p273 = scmp.eq.s32.totalorder %s22, 0
    %p274 = por %p272, %p273
    %p275 = scmp.ne.s32.totalorder %s263, %s264
    %p276 = scmp.eq.s32.totalorder %s23, 3
    %p277 = por %p275, %p276
    %p279 = scmp.ne.s32.totalorder %s264, %s278
    %p280 = scmp.eq.s32.totalorder %s23, 0
    %p281 = por %p279, %p280
    %s283 = sadd.s32 %s282, 1
    %p286 = scmp.eq.s32.totalorder %s17, 3
    %p287 = scmp.ne.s32.totalorder %s282, %s284
    %p288 = scmp.eq.s32.totalorder %s17, 0
    %p289 = por %p287, %p288
    %p290 = scmp.ne.s32.totalorder %s282, %s284
    %p291 = scmp.eq.s32.totalorder %s22, 3
    %p292 = por %p290, %p291
    %p293 = scmp.ne.s32.totalorder %s284, %s285
    %p294 = scmp.eq.s32.totalorder %s22, 0
    %p295 = por %p293, %p294
    %p296 = scmp.ne.s32.totalorder %s284, %s285
    %p297 = scmp.eq.s32.totalorder %s23, 3
    %p298 = por %p296, %p297
    %p300 = scmp.ne.s32.totalorder %s285, %s299
    %p301 = scmp.eq.s32.totalorder %s23, 0
    %p302 = por %p300, %p301
    %s303 = ssub.s32 %s24, %s36
    %p304 = scmp.eq.s32.totalorder %s303, 0
    %s306 = sadd.s32 %s305, 1
    %s307 = scalar_select %p304, %s305, %s306
    %p310 = pneg %p304
    %p311 = scmp.eq.s32.totalorder %s17, 3
    %p312 = por %p310, %p311
    %p313 = scmp.ne.s32.totalorder %s305, %s308
    %p314 = scmp.eq.s32.totalorder %s17, 0
    %p315 = por %p313, %p314
    %p316 = scmp.ne.s32.totalorder %s305, %s308
    %p317 = scmp.eq.s32.totalorder %s22, 3
    %p318 = por %p316, %p317
    %p319 = scmp.ne.s32.totalorder %s308, %s309
    %p320 = scmp.eq.s32.totalorder %s22, 0
    %p321 = por %p319, %p320
    %p322 = scmp.ne.s32.totalorder %s308, %s309
    %p323 = scmp.eq.s32.totalorder %s23, 3
    %p324 = por %p322, %p323
    %p326 = scmp.ne.s32.totalorder %s309, %s325
    %p327 = scmp.eq.s32.totalorder %s23, 0
    %p328 = por %p326, %p327
    %p329 = scmp.le.s32.totalorder 1, %s17
    %p330 = scmp.lt.s32.totalorder %s17, 5
    %p331 = pnand %p329, %p330
    %p332 = pneg %p331
    // Predicated region
    $region9: #{fwd.1} parent=5 // pred_check
      _
    $region10: #{fwd.1} parent=5 // pred_check_branch
      %334 = sbr.rel (%p331) target = $region12
    $region11: #{fwd.1} parent=5 // pred_region
      %s335 = ssub.s32 %s17, 1
      // Predicated region
      $region13: #{fwd.1} parent=11 // pred_check
        %p336 = pneg %p76
      $region14: #{fwd.1} parent=11 // pred_check_branch
        %338 = sbr.rel (%p336) target = $region16
      $region15: #{fwd.1} parent=11 // pred_region
        _
      $region16: #{fwd.1} parent=11 // pred_fallthru
        _
      // Predicated region
      $region17: #{fwd.1} parent=11 // pred_check
        %p339 = pneg %p97
      $region18: #{fwd.1} parent=11 // pred_check_branch
        %341 = sbr.rel (%p339) target = $region20
      $region19: #{fwd.1} parent=11 // pred_region
        _
      $region20: #{fwd.1} parent=11 // pred_fallthru
        _
      // Predicated region
      $region21: #{fwd.1} parent=11 // pred_check
        %p342 = pneg %p274
      $region22: #{fwd.1} parent=11 // pred_check_branch
        %344 = sbr.rel (%p342) target = $region24
      $region23: #{fwd.1} parent=11 // pred_region
        _
      $region24: #{fwd.1} parent=11 // pred_fallthru
        _
      // Predicated region
      $region25: #{fwd.1} parent=11 // pred_check
        %p345 = pneg %p295
      $region26: #{fwd.1} parent=11 // pred_check_branch
        %347 = sbr.rel (%p345) target = $region28
      $region27: #{fwd.1} parent=11 // pred_region
        _
      $region28: #{fwd.1} parent=11 // pred_fallthru
        _
    $region12: #{fwd.1} parent=5 // pred_fallthru
      _
    %p348 = scmp.lt.s32.totalorder %s17, 4
    // Predicated region
    $region29: #{fwd.1} parent=5 // pred_check
      %p349 = pneg %p348
    $region30: #{fwd.1} parent=5 // pred_check_branch
      %351 = sbr.rel (%p349) target = $region32
    $region31: #{fwd.1} parent=5 // pred_region
      // Predicated region
      $region33: #{fwd.1} parent=31 // pred_check
        %p352 = pneg %p49
      $region34: #{fwd.1} parent=31 // pred_check_branch
        %354 = sbr.rel (%p352) target = $region36
      $region35: #{fwd.1} parent=31 // pred_region
        %p355 = scmp.lt.s32.totalorder %s24, 1
        %s356 = scalar_select %p355, %s24, 1
        %s357 = smul.addr %s356, 8
        %s358 = scalar_lea.vmem %s0, %s357
      $region36: #{fwd.1} parent=31 // pred_fallthru
        _
      // Predicated region
      $region37: #{fwd.1} parent=31 // pred_check
        %p359 = pneg %p117
      $region38: #{fwd.1} parent=31 // pred_check_branch
        %361 = sbr.rel (%p359) target = $region40
      $region39: #{fwd.1} parent=31 // pred_region
        %p362 = scmp.lt.s32.totalorder %s25, 1
        %s363 = scalar_select %p362, %s25, 1
        %s364 = smul.addr %s363, 16
        %s365 = smul.addr %s364, 4
        %s366 = scalar_lea.vmem %s3, %s365
      $region40: #{fwd.1} parent=31 // pred_fallthru
        _
      // Predicated region
      $region41: #{fwd.1} parent=31 // pred_check
        %p367 = pneg %p143
      $region42: #{fwd.1} parent=31 // pred_check_branch
        %369 = sbr.rel (%p367) target = $region44
      $region43: #{fwd.1} parent=31 // pred_region
        %p370 = scmp.lt.s32.totalorder %s25, 1
        %s371 = scalar_select %p370, %s25, 1
        %s372 = smul.addr %s371, 8
        %s373 = smul.addr %s372, 4
        %s374 = scalar_lea.vmem %s4, %s373
      $region44: #{fwd.1} parent=31 // pred_fallthru
        _
      // Predicated region
      $region45: #{fwd.1} parent=31 // pred_check
        %p375 = pneg %p169
      $region46: #{fwd.1} parent=31 // pred_check_branch
        %377 = sbr.rel (%p375) target = $region48
      $region47: #{fwd.1} parent=31 // pred_region
        %p378 = scmp.lt.s32.totalorder %s25, 1
        %s379 = scalar_select %p378, %s25, 1
        %s380 = scalar_lea.vmem %s5, %s379
      $region48: #{fwd.1} parent=31 // pred_fallthru
        _
      // Predicated region
      $region49: #{fwd.1} parent=31 // pred_check
        %p381 = pneg %p195
      $region50: #{fwd.1} parent=31 // pred_check_branch
        %383 = sbr.rel (%p381) target = $region52
      $region51: #{fwd.1} parent=31 // pred_region
        %p384 = scmp.lt.s32.totalorder %s25, 1
        %s385 = scalar_select %p384, %s25, 1
        %s386 = scalar_lea.vmem %s6, %s385
      $region52: #{fwd.1} parent=31 // pred_fallthru
        _
      // Predicated region
      $region53: #{fwd.1} parent=31 // pred_check
        %p387 = pneg %p221
      $region54: #{fwd.1} parent=31 // pred_check_branch
        %389 = sbr.rel (%p387) target = $region56
      $region55: #{fwd.1} parent=31 // pred_region
        %p390 = scmp.lt.s32.totalorder %s25, 1
        %s391 = scalar_select %p390, %s25, 1
        %s392 = smul.addr %s391, 32
        %s393 = smul.addr %s392, 4
        %s394 = scalar_lea.vmem %s7, %s393
      $region56: #{fwd.1} parent=31 // pred_fallthru
        _
      // Predicated region
      $region57: #{fwd.1} parent=31 // pred_check
        %p395 = pneg %p247
      $region58: #{fwd.1} parent=31 // pred_check_branch
        %397 = sbr.rel (%p395) target = $region60
      $region59: #{fwd.1} parent=31 // pred_region
        %p398 = scmp.lt.s32.totalorder %s25, 1
        %s399 = scalar_select %p398, %s25, 1
        %s400 = smul.addr %s399, 32
        %s401 = smul.addr %s400, 4
        %s402 = scalar_lea.vmem %s8, %s401
      $region60: #{fwd.1} parent=31 // pred_fallthru
        _
    $region32: #{fwd.1} parent=5 // pred_fallthru
      _
    %p403 = scmp.le.s32.totalorder 1, %s17
    %p404 = scmp.lt.s32.totalorder %s17, 5
    %p405 = pnand %p403, %p404
    %p406 = pneg %p405
    // Predicated region
    $region61: #{fwd.1} parent=5 // pred_check
      _
    $region62: #{fwd.1} parent=5 // pred_check_branch
      %408 = sbr.rel (%p405) target = $region64
    $region63: #{fwd.1} parent=5 // pred_region
      %s409 = ssub.s32 %s17, 1
      %p410 = scmp.lt.s32.totalorder %s26, 1
      %s411 = scalar_select %p410, %s26, 1
      %s412 = smul.addr %s411, 8
      %s413 = scalar_lea.vmem %s0, %s412
      %p414 = pneg %p55
      %p415 = pneg %p52
      %p416 = pneg %p76
      %p417 = pneg %p73
      %p418 = pneg %p97
      %p419 = pneg %p94
      %p420 = scmp.lt.s32.totalorder %s27, 1
      %s421 = scalar_select %p420, %s27, 1
      %s422 = smul.addr %s421, 16
      %s423 = smul.addr %s422, 4
      %s424 = scalar_lea.vmem %s3, %s423
      %p425 = pneg %p123
      %p426 = pneg %p120
      %p427 = scmp.lt.s32.totalorder %s27, 1
      %s428 = scalar_select %p427, %s27, 1
      %s429 = smul.addr %s428, 8
      %s430 = smul.addr %s429, 4
      %s431 = scalar_lea.vmem %s4, %s430
      %p432 = pneg %p149
      %p433 = pneg %p146
      %p434 = scmp.lt.s32.totalorder %s27, 1
      %s435 = scalar_select %p434, %s27, 1
      %s436 = scalar_lea.vmem %s5, %s435
      %p437 = pneg %p175
      %p438 = pneg %p172
      %p439 = scmp.lt.s32.totalorder %s27, 1
      %s440 = scalar_select %p439, %s27, 1
      %s441 = scalar_lea.vmem %s6, %s440
      %p442 = pneg %p201
      %p443 = pneg %p198
      %p444 = scmp.lt.s32.totalorder %s27, 1
      %s445 = scalar_select %p444, %s27, 1
      %s446 = smul.addr %s445, 32
      %s447 = smul.addr %s446, 4
      %s448 = scalar_lea.vmem %s7, %s447
      %p449 = pneg %p227
      %p450 = pneg %p224
      %p451 = scmp.lt.s32.totalorder %s27, 1
      %s452 = scalar_select %p451, %s27, 1
      %s453 = smul.addr %s452, 32
      %s454 = smul.addr %s453, 4
      %s455 = scalar_lea.vmem %s8, %s454
      %p456 = pneg %p253
      %p457 = pneg %p250
      %p458 = pneg %p274
      %p459 = pneg %p271
      %p460 = pneg %p295
      %p461 = pneg %p292
      %p462 = pneg %p321
      %p463 = pneg %p318
      %p464 = scmp.lt.s32.totalorder %s26, 1
      %s465 = scalar_select %p464, %s26, 1
      %s466 = smul.addr %s465, 8
      %s467 = scalar_lea.vmem %s11, %s466
      %p468 = scmp.lt.s32.totalorder %s26, 1
      %s469 = scalar_select %p468, %s26, 1
      %s470 = smul.addr %s469, 8
      %s471 = scalar_lea.vmem %s0, %s470
      %p472 = scmp.lt.s32.totalorder %s27, 1
      %s473 = scalar_select %p472, %s27, 1
      %s474 = smul.addr %s473, 16
      %s475 = smul.addr %s474, 4
      %s476 = scalar_lea.vmem %s3, %s475
      %p477 = scmp.lt.s32.totalorder %s27, 1
      %s478 = scalar_select %p477, %s27, 1
      %s479 = smul.addr %s478, 8
      %s480 = smul.addr %s479, 4
      %s481 = scalar_lea.vmem %s4, %s480
      %p482 = scmp.lt.s32.totalorder %s27, 1
      %s483 = scalar_select %p482, %s27, 1
      %s484 = scalar_lea.vmem %s5, %s483
      %p485 = scmp.lt.s32.totalorder %s27, 1
      %s486 = scalar_select %p485, %s27, 1
      %s487 = scalar_lea.vmem %s6, %s486
      %p488 = scmp.lt.s32.totalorder %s27, 1
      %s489 = scalar_select %p488, %s27, 1
      %s490 = smul.addr %s489, 32
      %s491 = smul.addr %s490, 4
      %s492 = scalar_lea.vmem %s7, %s491
      %p493 = scmp.lt.s32.totalorder %s27, 1
      %s494 = scalar_select %p493, %s27, 1
      %s495 = smul.addr %s494, 32
      %s496 = smul.addr %s495, 4
      %s497 = scalar_lea.vmem %s8, %s496
      %p498 = scmp.lt.s32.totalorder %s26, 1
      %s499 = scalar_select %p498, %s26, 1
      %s500 = smul.addr %s499, 8
      %s501 = scalar_lea.vmem %s11, %s500
      %p503 = scmp.eq.s32.totalorder %s27, 0
      // Predicated region
      $region65: #{fwd.1} parent=63 // pred_check
        %p504 = pneg %p503
      $region66: #{fwd.1} parent=63 // pred_check_branch
        %506 = sbr.rel (%p504) target = $region68
      $region67: #{fwd.1} parent=63 // pred_region
        %v507 = vld [vmem:[%s471] sm:$0xff]
        %vm508 = vcmask 523264
        %509 = vst.msk [vmem:[#allocation2] sm:$0xff] %vm508, %v507
      $region68: #{fwd.1} parent=63 // pred_fallthru
        _
      %v510 = vld [vmem:[#allocation2] sm:$0xff]
      %v511 = vld [vmem:[%s484] sm:$0x1]
      %v512 = vmul.f32 %v510, %v510
      %vm513 = vcmask 523264
      %v514 = vsel %vm513, %v512, 0.0
      %515 = vadd.xlane.f32.xlu0 %v514
      %v516 = vpop.xlane.xlu0 %515
      %v517 = vrcp.pop 64.0
      %v518 = vmul.f32 %v516, %v517
      %v519 = vadd.f32 %v518, 1e-05
      %v520 = vrsqrt.pop %v519
      %v521 = vmul.f32 %v510, %v520
      %v523 = vlaneseq
      %v524 = vshrl.u32 %v523, 7
      %v525 = vsub.s32 0, %v524
      %v526 = vrot.slane %v511, %v525
      %v528 = vmul.f32 %v521, %v526
      %v529 = vpack.c.bf16 %v528, %v528
      %v530 = vld [vmem:[%s476] sm:$0xff]
      %v531 = vld [vmem:[%s476 + $0x8] sm:$0xff]
      %v532 = vld [vmem:[%s476 + $0x10] sm:$0xff]
      %v533 = vld [vmem:[%s476 + $0x18] sm:$0xff]
      %v534 = vld [vmem:[%s476 + $0x20] sm:$0xff]
      %v535 = vld [vmem:[%s476 + $0x28] sm:$0xff]
      %v536 = vld [vmem:[%s476 + $0x30] sm:$0xff]
      %v537 = vld [vmem:[%s476 + $0x38] sm:$0xff]
      %v546 = vunpack.c.l.b16 %v530
      %v547 = vunpack.c.h.b16 %v530
      %v548 = vunpack.c.l.b16 %v531
      %v549 = vunpack.c.h.b16 %v531
      %v550 = vunpack.c.l.b16 %v532
      %v551 = vunpack.c.h.b16 %v532
      %v552 = vunpack.c.l.b16 %v533
      %v553 = vunpack.c.h.b16 %v533
      %v554 = vunpack.c.l.b16 %v534
      %v555 = vunpack.c.h.b16 %v534
      %v556 = vunpack.c.l.b16 %v535
      %v557 = vunpack.c.h.b16 %v535
      %v558 = vunpack.c.l.b16 %v536
      %v559 = vunpack.c.h.b16 %v536
      %v560 = vunpack.c.l.b16 %v537
      %v561 = vunpack.c.h.b16 %v537
      %v562 = vpack.c.b16 %v548, %v546
      %v563 = vpack.c.b16 %v549, %v547
      %v564 = vpack.c.b16 %v552, %v550
      %v565 = vpack.c.b16 %v553, %v551
      %v566 = vpack.c.b16 %v556, %v554
      %v567 = vpack.c.b16 %v557, %v555
      %v568 = vpack.c.b16 %v560, %v558
      %v569 = vpack.c.b16 %v561, %v559
      %v579 = vsel %vm513, %v529, 0
      %581 = vmatprep.subr.bf16.mxu0 0
      %582 = vmatpush1.bf16.msra.mxu0 0
      %583 = vmatprep.subr.bf16.mxu0 0
      %584 = vmatpush1.bf16.msra.mxu0 0
      %585 = vmatprep.subr.bf16.mxu0 0
      %586 = vmatpush1.bf16.msra.mxu0 0
      %587 = vmatprep.subr.bf16.mxu0 0
      %588 = vmatpush1.bf16.msra.mxu0 0
      %589 = vmatprep.subr.bf16.mxu0 %v569
      %590 = vmatpush1.bf16.msra.mxu0 %v568
      %591 = vmatprep.subr.bf16.mxu0 %v567
      %592 = vmatpush1.bf16.msra.mxu0 %v566
      %593 = vmatprep.subr.bf16.mxu0 %v565
      %594 = vmatpush1.bf16.msra.mxu0 %v564
      %595 = vmatprep.subr.bf16.mxu0 %v563
      %596 = vmatpush1.bf16.msra.mxu0 %v562
      %597 = vmatprep.subr.bf16.mxu0 0
      %598 = vmatpush2.bf16.msra.mxu0 0
      %599 = vmatprep.subr.bf16.mxu0 0
      %600 = vmatpush2.bf16.msra.mxu0 0
      %601 = vmatprep.subr.bf16.mxu0 0
      %602 = vmatpush2.bf16.msra.mxu0 0
      %603 = vmatprep.subr.bf16.mxu0 0
      %604 = vmatpush2.bf16.msra.mxu0 0
      %605 = vmatprep.subr.bf16.mxu0 0
      %606 = vmatpush2.bf16.msra.mxu0 0
      %607 = vmatprep.subr.bf16.mxu0 0
      %608 = vmatpush2.bf16.msra.mxu0 0
      %609 = vmatprep.subr.bf16.mxu0 0
      %610 = vmatpush2.bf16.msra.mxu0 0
      %611 = vmatprep.subr.bf16.mxu0 0
      %612 = vmatpush2.bf16.msra.mxu0 0
      %613 = vmatprep.mubr.bf16.mxu0 0
      %614 = vmatmul.mubr.bf16.gmra.mxu0 %v579
      %v615 = vpop.f32.mrf.mxu0
      %v616 = vadd.f32 0.0, %v615
      %v617 = vpop.f32.mrf.mxu0
      %v618 = vadd.f32 0.0, %v617
      %v619 = vpop.f32.mrf.mxu0
      %v620 = vpop.f32.mrf.mxu0
      %621 = vdwg.mxu0
      %v622 = vld [vmem:[%s1] sm:$0xff]
      %v623 = vld [vmem:[%s2] sm:$0xff]
      %v624 = vmul.f32 %v616, %v622
      %626 = vrot.lane.b32.xlu0 %v623, 64
      %v627 = vpop.permute.xlu0 %626
      %v629 = vmul.f32 %v616, %v627
      %631 = vrot.lane.b32.xlu0 %v629, 64
      %v632 = vpop.permute.xlu0 %631
      %v634 = vadd.f32 %v624, %v632
      %v635 = vmul.f32 %v618, %v622
      %636 = vrot.lane.b32.xlu0 %v623, 32
      %v637 = vpop.permute.xlu0 %636
      %v639 = vmul.f32 %v618, %v637
      %641 = vrot.lane.b32.xlu0 %v639, 96
      %v642 = vpop.permute.xlu0 %641
      %v644 = vadd.f32 %v635, %v642
      %v645 = vlaneseq
      %v646 = vshrl.u32 %v645, 7
      %v647 = vlaneseq
      %v648 = vand.u32 %v647, 127
      %vm649 = vcmp.le.s32.totalorder %v648, %v646
      %v650 = vsel %vm649, 0.0, -inf
      %v651 = vpack.c.bf16 %v634, %v634
      %v652 = vpack.c.bf16 %v644, %v644
      %v653 = vpack.c.bf16 %v618, %v618
      %vm654 = vcmask 130048
      %v656 = vsel %vm654, %v651, 0
      %v659 = vsel %vm654, %v652, 0
      %661 = vmatprep.subr.bf16.mxu0 0
      %662 = vmatpush1.bf16.xpose.msra.mxu0 0
      %663 = vmatprep.subr.bf16.mxu0 0
      %664 = vmatpush1.bf16.xpose.msra.mxu0 0
      %665 = vmatprep.subr.bf16.mxu0 0
      %666 = vmatpush1.bf16.xpose.msra.mxu0 0
      %667 = vmatprep.subr.bf16.mxu0 0
      %668 = vmatpush1.bf16.xpose.msra.mxu0 0
      %669 = vmatprep.subr.bf16.mxu0 0
      %670 = vmatpush1.bf16.xpose.msra.mxu0 0
      %671 = vmatprep.subr.bf16.mxu0 0
      %672 = vmatpush1.bf16.xpose.msra.mxu0 0
      %673 = vmatprep.subr.bf16.mxu0 0
      %674 = vmatpush1.bf16.xpose.msra.mxu0 0
      %675 = vmatprep.subr.bf16.mxu0 0
      %676 = vmatpush1.bf16.xpose.msra.mxu0 %v659
      %677 = vmatprep.subr.bf16.mxu0 0
      %678 = vmatpush2.bf16.xpose.msra.mxu0 0
      %679 = vmatprep.subr.bf16.mxu0 0
      %680 = vmatpush2.bf16.xpose.msra.mxu0 0
      %681 = vmatprep.subr.bf16.mxu0 0
      %682 = vmatpush2.bf16.xpose.msra.mxu0 0
      %683 = vmatprep.subr.bf16.mxu0 0
      %684 = vmatpush2.bf16.xpose.msra.mxu0 0
      %685 = vmatprep.subr.bf16.mxu0 0
      %686 = vmatpush2.bf16.xpose.msra.mxu0 0
      %687 = vmatprep.subr.bf16.mxu0 0
      %688 = vmatpush2.bf16.xpose.msra.mxu0 0
      %689 = vmatprep.subr.bf16.mxu0 0
      %690 = vmatpush2.bf16.xpose.msra.mxu0 0
      %691 = vmatprep.subr.bf16.mxu0 0
      %692 = vmatpush2.bf16.xpose.msra.mxu0 0
      %693 = vmatprep.mubr.bf16.mxu0 0
      %694 = vmatmul.mubr.bf16.gmra.mxu0 %v656
      %v695 = vpop.f32.mrf.mxu0
      %v696 = vadd.f32 0.0, %v695
      %v697 = vpop.f32.mrf.mxu0
      %v698 = vpop.f32.mrf.mxu0
      %v699 = vpop.f32.mrf.mxu0
      %700 = vdwg.mxu0
      %v701 = vmul.f32 %v696, 0.25
      %v702 = vadd.f32 %v701, %v650
      %vm703 = vcmask 64512
      %v704 = vsel %vm703, %v702, -inf
      %705 = vmax.xlane.f32.xlu0 %v704
      %v706 = vpop.xlane.xlu0 %705
      %v707 = vsub.f32 %v702, %v706
      %v708 = vmul.f32 %v707, 1.442695
      %v709 = vpow.pop %v708
      %v710 = vsel %vm703, %v709, 0.0
      %711 = vadd.xlane.f32.xlu0 %v710
      %v712 = vpop.xlane.xlu0 %711
      %v713 = vrcp.pop %v712
      %v714 = vmul.f32 %v709, %v713
      %v715 = vpack.c.bf16 %v714, %v714
      %717 = vrot.lane.b32.xlu0 %v653, 64
      %v718 = vpop.permute.xlu0 %717
      %v720 = vsel %vm703, %v715, 0
      %vm722 = vcmask 1043456
      %v724 = vsel %vm722, %v718, 0
      %726 = vmatprep.subr.bf16.mxu0 0
      %727 = vmatpush1.bf16.msra.mxu0 0
      %728 = vmatprep.subr.bf16.mxu0 0
      %729 = vmatpush1.bf16.msra.mxu0 0
      %730 = vmatprep.subr.bf16.mxu0 0
      %731 = vmatpush1.bf16.msra.mxu0 0
      %732 = vmatprep.subr.bf16.mxu0 0
      %733 = vmatpush1.bf16.msra.mxu0 0
      %734 = vmatprep.subr.bf16.mxu0 0
      %735 = vmatpush1.bf16.msra.mxu0 0
      %736 = vmatprep.subr.bf16.mxu0 0
      %737 = vmatpush1.bf16.msra.mxu0 0
      %738 = vmatprep.subr.bf16.mxu0 0
      %739 = vmatpush1.bf16.msra.mxu0 0
      %740 = vmatprep.subr.bf16.mxu0 0
      %741 = vmatpush1.bf16.msra.mxu0 %v724
      %742 = vmatprep.subr.bf16.mxu0 0
      %743 = vmatpush2.bf16.msra.mxu0 0
      %744 = vmatprep.subr.bf16.mxu0 0
      %745 = vmatpush2.bf16.msra.mxu0 0
      %746 = vmatprep.subr.bf16.mxu0 0
      %747 = vmatpush2.bf16.msra.mxu0 0
      %748 = vmatprep.subr.bf16.mxu0 0
      %749 = vmatpush2.bf16.msra.mxu0 0
      %750 = vmatprep.subr.bf16.mxu0 0
      %751 = vmatpush2.bf16.msra.mxu0 0
      %752 = vmatprep.subr.bf16.mxu0 0
      %753 = vmatpush2.bf16.msra.mxu0 0
      %754 = vmatprep.subr.bf16.mxu0 0
      %755 = vmatpush2.bf16.msra.mxu0 0
      %756 = vmatprep.subr.bf16.mxu0 0
      %757 = vmatpush2.bf16.msra.mxu0 0
      %758 = vmatprep.mubr.bf16.mxu0 0
      %759 = vmatmul.mubr.bf16.gmra.mxu0 %v720
      %v760 = vpop.f32.mrf.mxu0
      %v761 = vadd.f32 0.0, %v760
      %v762 = vpop.f32.mrf.mxu0
      %v763 = vpop.f32.mrf.mxu0
      %v764 = vpop.f32.mrf.mxu0
      %765 = vdwg.mxu0
      %767 = vrot.lane.b32.xlu0 %v651, 112
      %v768 = vpop.permute.xlu0 %767
      %v770 = vsel %vm654, %v768, 0
      %772 = vmatprep.subr.bf16.mxu0 0
      %773 = vmatpush1.bf16.xpose.msra.mxu0 0
      %774 = vmatprep.subr.bf16.mxu0 0
      %775 = vmatpush1.bf16.xpose.msra.mxu0 0
      %776 = vmatprep.subr.bf16.mxu0 0
      %777 = vmatpush1.bf16.xpose.msra.mxu0 0
      %778 = vmatprep.subr.bf16.mxu0 0
      %779 = vmatpush1.bf16.xpose.msra.mxu0 0
      %780 = vmatprep.subr.bf16.mxu0 0
      %781 = vmatpush1.bf16.xpose.msra.mxu0 0
      %782 = vmatprep.subr.bf16.mxu0 0
      %783 = vmatpush1.bf16.xpose.msra.mxu0 0
      %784 = vmatprep.subr.bf16.mxu0 0
      %785 = vmatpush1.bf16.xpose.msra.mxu0 0
      %786 = vmatprep.subr.bf16.mxu0 0
      %787 = vmatpush1.bf16.xpose.msra.mxu0 %v659
      %788 = vmatprep.subr.bf16.mxu0 0
      %789 = vmatpush2.bf16.xpose.msra.mxu0 0
      %790 = vmatprep.subr.bf16.mxu0 0
      %791 = vmatpush2.bf16.xpose.msra.mxu0 0
      %792 = vmatprep.subr.bf16.mxu0 0
      %793 = vmatpush2.bf16.xpose.msra.mxu0 0
      %794 = vmatprep.subr.bf16.mxu0 0
      %795 = vmatpush2.bf16.xpose.msra.mxu0 0
      %796 = vmatprep.subr.bf16.mxu0 0
      %797 = vmatpush2.bf16.xpose.msra.mxu0 0
      %798 = vmatprep.subr.bf16.mxu0 0
      %799 = vmatpush2.bf16.xpose.msra.mxu0 0
      %800 = vmatprep.subr.bf16.mxu0 0
      %801 = vmatpush2.bf16.xpose.msra.mxu0 0
      %802 = vmatprep.subr.bf16.mxu0 0
      %803 = vmatpush2.bf16.xpose.msra.mxu0 0
      %804 = vmatprep.mubr.bf16.mxu0 0
      %805 = vmatmul.mubr.bf16.gmra.mxu0 %v770
      %v806 = vpop.f32.mrf.mxu0
      %v807 = vadd.f32 0.0, %v806
      %v808 = vpop.f32.mrf.mxu0
      %v809 = vpop.f32.mrf.mxu0
      %v810 = vpop.f32.mrf.mxu0
      %811 = vdwg.mxu0
      %v812 = vmul.f32 %v807, 0.25
      %v813 = vadd.f32 %v812, %v650
      %v814 = vsel %vm703, %v813, -inf
      %815 = vmax.xlane.f32.xlu0 %v814
      %v816 = vpop.xlane.xlu0 %815
      %v817 = vsub.f32 %v813, %v816
      %v818 = vmul.f32 %v817, 1.442695
      %v819 = vpow.pop %v818
      %v820 = vsel %vm703, %v819, 0.0
      %821 = vadd.xlane.f32.xlu0 %v820
      %v822 = vpop.xlane.xlu0 %821
      %v823 = vrcp.pop %v822
      %v824 = vmul.f32 %v819, %v823
      %v825 = vpack.c.bf16 %v824, %v824
      %v827 = vsel %vm703, %v825, 0
      %829 = vmatprep.subr.bf16.mxu0 0
      %830 = vmatpush1.bf16.msra.mxu0 0
      %831 = vmatprep.subr.bf16.mxu0 0
      %832 = vmatpush1.bf16.msra.mxu0 0
      %833 = vmatprep.subr.bf16.mxu0 0
      %834 = vmatpush1.bf16.msra.mxu0 0
      %835 = vmatprep.subr.bf16.mxu0 0
      %836 = vmatpush1.bf16.msra.mxu0 0
      %837 = vmatprep.subr.bf16.mxu0 0
      %838 = vmatpush1.bf16.msra.mxu0 0
      %839 = vmatprep.subr.bf16.mxu0 0
      %840 = vmatpush1.bf16.msra.mxu0 0
      %841 = vmatprep.subr.bf16.mxu0 0
      %842 = vmatpush1.bf16.msra.mxu0 0
      %843 = vmatprep.subr.bf16.mxu0 0
      %844 = vmatpush1.bf16.msra.mxu0 %v724
      %845 = vmatprep.subr.bf16.mxu0 0
      %846 = vmatpush2.bf16.msra.mxu0 0
      %847 = vmatprep.subr.bf16.mxu0 0
      %848 = vmatpush2.bf16.msra.mxu0 0
      %849 = vmatprep.subr.bf16.mxu0 0
      %850 = vmatpush2.bf16.msra.mxu0 0
      %851 = vmatprep.subr.bf16.mxu0 0
      %852 = vmatpush2.bf16.msra.mxu0 0
      %853 = vmatprep.subr.bf16.mxu0 0
      %854 = vmatpush2.bf16.msra.mxu0 0
      %855 = vmatprep.subr.bf16.mxu0 0
      %856 = vmatpush2.bf16.msra.mxu0 0
      %857 = vmatprep.subr.bf16.mxu0 0
      %858 = vmatpush2.bf16.msra.mxu0 0
      %859 = vmatprep.subr.bf16.mxu0 0
      %860 = vmatpush2.bf16.msra.mxu0 0
      %861 = vmatprep.mubr.bf16.mxu0 0
      %862 = vmatmul.mubr.bf16.gmra.mxu0 %v827
      %v863 = vpop.f32.mrf.mxu0
      %v864 = vadd.f32 0.0, %v863
      %v865 = vpop.f32.mrf.mxu0
      %v866 = vpop.f32.mrf.mxu0
      %v867 = vpop.f32.mrf.mxu0
      %868 = vdwg.mxu0
      %869 = vrot.lane.b32.xlu0 %v651, 96
      %v870 = vpop.permute.xlu0 %869
      %872 = vrot.lane.b32.xlu0 %v652, 112
      %v873 = vpop.permute.xlu0 %872
      %v875 = vsel %vm654, %v870, 0
      %v878 = vsel %vm654, %v873, 0
      %880 = vmatprep.subr.bf16.mxu0 0
      %881 = vmatpush1.bf16.xpose.msra.mxu0 0
      %882 = vmatprep.subr.bf16.mxu0 0
      %883 = vmatpush1.bf16.xpose.msra.mxu0 0
      %884 = vmatprep.subr.bf16.mxu0 0
      %885 = vmatpush1.bf16.xpose.msra.mxu0 0
      %886 = vmatprep.subr.bf16.mxu0 0
      %887 = vmatpush1.bf16.xpose.msra.mxu0 0
      %888 = vmatprep.subr.bf16.mxu0 0
      %889 = vmatpush1.bf16.xpose.msra.mxu0 0
      %890 = vmatprep.subr.bf16.mxu0 0
      %891 = vmatpush1.bf16.xpose.msra.mxu0 0
      %892 = vmatprep.subr.bf16.mxu0 0
      %893 = vmatpush1.bf16.xpose.msra.mxu0 0
      %894 = vmatprep.subr.bf16.mxu0 0
      %895 = vmatpush1.bf16.xpose.msra.mxu0 %v878
      %896 = vmatprep.subr.bf16.mxu0 0
      %897 = vmatpush2.bf16.xpose.msra.mxu0 0
      %898 = vmatprep.subr.bf16.mxu0 0
      %899 = vmatpush2.bf16.xpose.msra.mxu0 0
      %900 = vmatprep.subr.bf16.mxu0 0
      %901 = vmatpush2.bf16.xpose.msra.mxu0 0
      %902 = vmatprep.subr.bf16.mxu0 0
      %903 = vmatpush2.bf16.xpose.msra.mxu0 0
      %904 = vmatprep.subr.bf16.mxu0 0
      %905 = vmatpush2.bf16.xpose.msra.mxu0 0
      %906 = vmatprep.subr.bf16.mxu0 0
      %907 = vmatpush2.bf16.xpose.msra.mxu0 0
      %908 = vmatprep.subr.bf16.mxu0 0
      %909 = vmatpush2.bf16.xpose.msra.mxu0 0
      %910 = vmatprep.subr.bf16.mxu0 0
      %911 = vmatpush2.bf16.xpose.msra.mxu0 0
      %912 = vmatprep.mubr.bf16.mxu0 0
      %913 = vmatmul.mubr.bf16.gmra.mxu0 %v875
      %v914 = vpop.f32.mrf.mxu0
      %v915 = vadd.f32 0.0, %v914
      %v916 = vpop.f32.mrf.mxu0
      %v917 = vpop.f32.mrf.mxu0
      %v918 = vpop.f32.mrf.mxu0
      %919 = vdwg.mxu0
      %v920 = vmul.f32 %v915, 0.25
      %v921 = vadd.f32 %v920, %v650
      %v922 = vsel %vm703, %v921, -inf
      %923 = vmax.xlane.f32.xlu0 %v922
      %v924 = vpop.xlane.xlu0 %923
      %v925 = vsub.f32 %v921, %v924
      %v926 = vmul.f32 %v925, 1.442695
      %v927 = vpow.pop %v926
      %v928 = vsel %vm703, %v927, 0.0
      %929 = vadd.xlane.f32.xlu0 %v928
      %v930 = vpop.xlane.xlu0 %929
      %v931 = vrcp.pop %v930
      %v932 = vmul.f32 %v927, %v931
      %v933 = vpack.c.bf16 %v932, %v932
      %934 = vrot.lane.b32.xlu0 %v653, 48
      %v935 = vpop.permute.xlu0 %934
      %v937 = vsel %vm703, %v933, 0
      %v940 = vsel %vm722, %v935, 0
      %942 = vmatprep.subr.bf16.mxu0 0
      %943 = vmatpush1.bf16.msra.mxu0 0
      %944 = vmatprep.subr.bf16.mxu0 0
      %945 = vmatpush1.bf16.msra.mxu0 0
      %946 = vmatprep.subr.bf16.mxu0 0
      %947 = vmatpush1.bf16.msra.mxu0 0
      %948 = vmatprep.subr.bf16.mxu0 0
      %949 = vmatpush1.bf16.msra.mxu0 0
      %950 = vmatprep.subr.bf16.mxu0 0
      %951 = vmatpush1.bf16.msra.mxu0 0
      %952 = vmatprep.subr.bf16.mxu0 0
      %953 = vmatpush1.bf16.msra.mxu0 0
      %954 = vmatprep.subr.bf16.mxu0 0
      %955 = vmatpush1.bf16.msra.mxu0 0
      %956 = vmatprep.subr.bf16.mxu0 0
      %957 = vmatpush1.bf16.msra.mxu0 %v940
      %958 = vmatprep.subr.bf16.mxu0 0
      %959 = vmatpush2.bf16.msra.mxu0 0
      %960 = vmatprep.subr.bf16.mxu0 0
      %961 = vmatpush2.bf16.msra.mxu0 0
      %962 = vmatprep.subr.bf16.mxu0 0
      %963 = vmatpush2.bf16.msra.mxu0 0
      %964 = vmatprep.subr.bf16.mxu0 0
      %965 = vmatpush2.bf16.msra.mxu0 0
      %966 = vmatprep.subr.bf16.mxu0 0
      %967 = vmatpush2.bf16.msra.mxu0 0
      %968 = vmatprep.subr.bf16.mxu0 0
      %969 = vmatpush2.bf16.msra.mxu0 0
      %970 = vmatprep.subr.bf16.mxu0 0
      %971 = vmatpush2.bf16.msra.mxu0 0
      %972 = vmatprep.subr.bf16.mxu0 0
      %973 = vmatpush2.bf16.msra.mxu0 0
      %974 = vmatprep.mubr.bf16.mxu0 0
      %975 = vmatmul.mubr.bf16.gmra.mxu0 %v937
      %v976 = vpop.f32.mrf.mxu0
      %v977 = vadd.f32 0.0, %v976
      %v978 = vpop.f32.mrf.mxu0
      %v979 = vpop.f32.mrf.mxu0
      %v980 = vpop.f32.mrf.mxu0
      %981 = vdwg.mxu0
      %982 = vrot.lane.b32.xlu0 %v651, 80
      %v983 = vpop.permute.xlu0 %982
      %v985 = vsel %vm654, %v983, 0
      %987 = vmatprep.subr.bf16.mxu0 0
      %988 = vmatpush1.bf16.xpose.msra.mxu0 0
      %989 = vmatprep.subr.bf16.mxu0 0
      %990 = vmatpush1.bf16.xpose.msra.mxu0 0
      %991 = vmatprep.subr.bf16.mxu0 0
      %992 = vmatpush1.bf16.xpose.msra.mxu0 0
      %993 = vmatprep.subr.bf16.mxu0 0
      %994 = vmatpush1.bf16.xpose.msra.mxu0 0
      %995 = vmatprep.subr.bf16.mxu0 0
      %996 = vmatpush1.bf16.xpose.msra.mxu0 0
      %997 = vmatprep.subr.bf16.mxu0 0
      %998 = vmatpush1.bf16.xpose.msra.mxu0 0
      %999 = vmatprep.subr.bf16.mxu0 0
      %1000 = vmatpush1.bf16.xpose.msra.mxu0 0
      %1001 = vmatprep.subr.bf16.mxu0 0
      %1002 = vmatpush1.bf16.xpose.msra.mxu0 %v878
      %1003 = vmatprep.subr.bf16.mxu0 0
      %1004 = vmatpush2.bf16.xpose.msra.mxu0 0
      %1005 = vmatprep.subr.bf16.mxu0 0
      %1006 = vmatpush2.bf16.xpose.msra.mxu0 0
      %1007 = vmatprep.subr.bf16.mxu0 0
      %1008 = vmatpush2.bf16.xpose.msra.mxu0 0
      %1009 = vmatprep.subr.bf16.mxu0 0
      %1010 = vmatpush2.bf16.xpose.msra.mxu0 0
      %1011 = vmatprep.subr.bf16.mxu0 0
      %1012 = vmatpush2.bf16.xpose.msra.mxu0 0
      %1013 = vmatprep.subr.bf16.mxu0 0
      %1014 = vmatpush2.bf16.xpose.msra.mxu0 0
      %1015 = vmatprep.subr.bf16.mxu0 0
      %1016 = vmatpush2.bf16.xpose.msra.mxu0 0
      %1017 = vmatprep.subr.bf16.mxu0 0
      %1018 = vmatpush2.bf16.xpose.msra.mxu0 0
      %1019 = vmatprep.mubr.bf16.mxu0 0
      %1020 = vmatmul.mubr.bf16.gmra.mxu0 %v985
      %v1021 = vpop.f32.mrf.mxu0
      %v1022 = vadd.f32 0.0, %v1021
      %v1023 = vpop.f32.mrf.mxu0
      %v1024 = vpop.f32.mrf.mxu0
      %v1025 = vpop.f32.mrf.mxu0
      %1026 = vdwg.mxu0
      %v1027 = vmul.f32 %v1022, 0.25
      %v1028 = vadd.f32 %v1027, %v650
      %v1029 = vsel %vm703, %v1028, -inf
      %1030 = vmax.xlane.f32.xlu0 %v1029
      %v1031 = vpop.xlane.xlu0 %1030
      %v1032 = vsub.f32 %v1028, %v1031
      %v1033 = vmul.f32 %v1032, 1.442695
      %v1034 = vpow.pop %v1033
      %v1035 = vsel %vm703, %v1034, 0.0
      %1036 = vadd.xlane.f32.xlu0 %v1035
      %v1037 = vpop.xlane.xlu0 %1036
      %v1038 = vrcp.pop %v1037
      %v1039 = vmul.f32 %v1034, %v1038
      %v1040 = vpack.c.bf16 %v1039, %v1039
      %v1042 = vsel %vm703, %v1040, 0
      %1044 = vmatprep.subr.bf16.mxu0 0
      %1045 = vmatpush1.bf16.msra.mxu0 0
      %1046 = vmatprep.subr.bf16.mxu0 0
      %1047 = vmatpush1.bf16.msra.mxu0 0
      %1048 = vmatprep.subr.bf16.mxu0 0
      %1049 = vmatpush1.bf16.msra.mxu0 0
      %1050 = vmatprep.subr.bf16.mxu0 0
      %1051 = vmatpush1.bf16.msra.mxu0 0
      %1052 = vmatprep.subr.bf16.mxu0 0
      %1053 = vmatpush1.bf16.msra.mxu0 0
      %1054 = vmatprep.subr.bf16.mxu0 0
      %1055 = vmatpush1.bf16.msra.mxu0 0
      %1056 = vmatprep.subr.bf16.mxu0 0
      %1057 = vmatpush1.bf16.msra.mxu0 0
      %1058 = vmatprep.subr.bf16.mxu0 0
      %1059 = vmatpush1.bf16.msra.mxu0 %v940
      %1060 = vmatprep.subr.bf16.mxu0 0
      %1061 = vmatpush2.bf16.msra.mxu0 0
      %1062 = vmatprep.subr.bf16.mxu0 0
      %1063 = vmatpush2.bf16.msra.mxu0 0
      %1064 = vmatprep.subr.bf16.mxu0 0
      %1065 = vmatpush2.bf16.msra.mxu0 0
      %1066 = vmatprep.subr.bf16.mxu0 0
      %1067 = vmatpush2.bf16.msra.mxu0 0
      %1068 = vmatprep.subr.bf16.mxu0 0
      %1069 = vmatpush2.bf16.msra.mxu0 0
      %1070 = vmatprep.subr.bf16.mxu0 0
      %1071 = vmatpush2.bf16.msra.mxu0 0
      %1072 = vmatprep.subr.bf16.mxu0 0
      %1073 = vmatpush2.bf16.msra.mxu0 0
      %1074 = vmatprep.subr.bf16.mxu0 0
      %1075 = vmatpush2.bf16.msra.mxu0 0
      %1076 = vmatprep.mubr.bf16.mxu0 0
      %1077 = vmatmul.mubr.bf16.gmra.mxu0 %v1042
      %v1078 = vpop.f32.mrf.mxu0
      %v1079 = vadd.f32 0.0, %v1078
      %v1080 = vpop.f32.mrf.mxu0
      %v1081 = vpop.f32.mrf.mxu0
      %v1082 = vpop.f32.mrf.mxu0
      %1083 = vdwg.mxu0
      %1085 = vrot.lane.b32.xlu0 %v864, 16
      %v1086 = vpop.permute.xlu0 %1085
      %1089 = vrot.lane.b32.xlu0 %v977, 32
      %v1090 = vpop.permute.xlu0 %1089
      %1093 = vrot.lane.b32.xlu0 %v1079, 48
      %v1094 = vpop.permute.xlu0 %1093
      %v1096 = vsel %vm654, %v761, %v1086
      %vm1097 = vcmask 261120
      %v1098 = vsel %vm1097, %v1096, %v1090
      %vm1099 = vcmask 392192
      %v1100 = vsel %vm1099, %v1098, %v1094
      %v1101 = vpack.c.bf16 %v1100, %v1100
      %v1102 = vld [vmem:[%s481] sm:$0xf]
      %v1103 = vld [vmem:[%s481 + $0x4] sm:$0xf]
      %v1104 = vld [vmem:[%s481 + $0x8] sm:$0xf]
      %v1105 = vld [vmem:[%s481 + $0xc] sm:$0xf]
      %v1106 = vld [vmem:[%s481 + $0x10] sm:$0xf]
      %v1107 = vld [vmem:[%s481 + $0x14] sm:$0xf]
      %v1108 = vld [vmem:[%s481 + $0x18] sm:$0xf]
      %v1109 = vld [vmem:[%s481 + $0x1c] sm:$0xf]
      %v1118 = vunpack.c.l.b16 %v1102
      %v1119 = vunpack.c.l.b16 %v1103
      %v1120 = vunpack.c.l.b16 %v1104
      %v1121 = vunpack.c.l.b16 %v1105
      %v1122 = vunpack.c.l.b16 %v1106
      %v1123 = vunpack.c.l.b16 %v1107
      %v1124 = vunpack.c.l.b16 %v1108
      %v1125 = vunpack.c.l.b16 %v1109
      %v1126 = vpack.c.b16 %v1119, %v1118
      %v1127 = vpack.c.b16 %v1121, %v1120
      %v1128 = vpack.c.b16 %v1123, %v1122
      %v1129 = vpack.c.b16 %v1125, %v1124
      %v1135 = vsel %vm513, %v1101, 0
      %1137 = vmatprep.subr.bf16.mxu0 0
      %1138 = vmatpush1.bf16.msra.mxu0 0
      %1139 = vmatprep.subr.bf16.mxu0 0
      %1140 = vmatpush1.bf16.msra.mxu0 0
      %1141 = vmatprep.subr.bf16.mxu0 0
      %1142 = vmatpush1.bf16.msra.mxu0 0
      %1143 = vmatprep.subr.bf16.mxu0 0
      %1144 = vmatpush1.bf16.msra.mxu0 0
      %1145 = vmatprep.subr.bf16.mxu0 0
      %1146 = vmatpush1.bf16.msra.mxu0 %v1129
      %1147 = vmatprep.subr.bf16.mxu0 0
      %1148 = vmatpush1.bf16.msra.mxu0 %v1128
      %1149 = vmatprep.subr.bf16.mxu0 0
      %1150 = vmatpush1.bf16.msra.mxu0 %v1127
      %1151 = vmatprep.subr.bf16.mxu0 0
      %1152 = vmatpush1.bf16.msra.mxu0 %v1126
      %1153 = vmatprep.subr.bf16.mxu0 0
      %1154 = vmatpush2.bf16.msra.mxu0 0
      %1155 = vmatprep.subr.bf16.mxu0 0
      %1156 = vmatpush2.bf16.msra.mxu0 0
      %1157 = vmatprep.subr.bf16.mxu0 0
      %1158 = vmatpush2.bf16.msra.mxu0 0
      %1159 = vmatprep.subr.bf16.mxu0 0
      %1160 = vmatpush2.bf16.msra.mxu0 0
      %1161 = vmatprep.subr.bf16.mxu0 0
      %1162 = vmatpush2.bf16.msra.mxu0 0
      %1163 = vmatprep.subr.bf16.mxu0 0
      %1164 = vmatpush2.bf16.msra.mxu0 0
      %1165 = vmatprep.subr.bf16.mxu0 0
      %1166 = vmatpush2.bf16.msra.mxu0 0
      %1167 = vmatprep.subr.bf16.mxu0 0
      %1168 = vmatpush2.bf16.msra.mxu0 0
      %1169 = vmatprep.mubr.bf16.mxu0 0
      %1170 = vmatmul.mubr.bf16.gmra.mxu0 %v1135
      %v1171 = vpop.f32.mrf.mxu0
      %v1172 = vadd.f32 0.0, %v1171
      %v1173 = vpop.f32.mrf.mxu0
      %v1174 = vpop.f32.mrf.mxu0
      %v1175 = vpop.f32.mrf.mxu0
      %1176 = vdwg.mxu0
      %v1177 = vadd.f32 %v510, %v1172
      %v1178 = vld [vmem:[%s487] sm:$0x1]
      %v1179 = vmul.f32 %v1177, %v1177
      %v1180 = vsel %vm513, %v1179, 0.0
      %1181 = vadd.xlane.f32.xlu0 %v1180
      %v1182 = vpop.xlane.xlu0 %1181
      %v1183 = vmul.f32 %v1182, %v517
      %v1184 = vadd.f32 %v1183, 1e-05
      %v1185 = vrsqrt.pop %v1184
      %v1186 = vmul.f32 %v1177, %v1185
      %v1188 = vlaneseq
      %v1189 = vshrl.u32 %v1188, 7
      %v1190 = vsub.s32 0, %v1189
      %v1191 = vrot.slane %v1178, %v1190
      %v1193 = vmul.f32 %v1186, %v1191
      %v1194 = vpack.c.bf16 %v1193, %v1193
      %v1195 = vld [vmem:[%s492] sm:$0xff]
      %v1196 = vld [vmem:[%s492 + $0x8] sm:$0xff]
      %v1197 = vld [vmem:[%s492 + $0x10] sm:$0xff]
      %v1198 = vld [vmem:[%s492 + $0x18] sm:$0xff]
      %v1199 = vld [vmem:[%s492 + $0x20] sm:$0xff]
      %v1200 = vld [vmem:[%s492 + $0x28] sm:$0xff]
      %v1201 = vld [vmem:[%s492 + $0x30] sm:$0xff]
      %v1202 = vld [vmem:[%s492 + $0x38] sm:$0xff]
      %v1203 = vld [vmem:[%s492 + $0x40] sm:$0xff]
      %v1204 = vld [vmem:[%s492 + $0x48] sm:$0xff]
      %v1205 = vld [vmem:[%s492 + $0x50] sm:$0xff]
      %v1206 = vld [vmem:[%s492 + $0x58] sm:$0xff]
      %v1207 = vld [vmem:[%s492 + $0x60] sm:$0xff]
      %v1208 = vld [vmem:[%s492 + $0x68] sm:$0xff]
      %v1209 = vld [vmem:[%s492 + $0x70] sm:$0xff]
      %v1210 = vld [vmem:[%s492 + $0x78] sm:$0xff]
      %v1227 = vunpack.c.l.b16 %v1195
      %v1228 = vunpack.c.h.b16 %v1195
      %v1229 = vunpack.c.l.b16 %v1196
      %v1230 = vunpack.c.h.b16 %v1196
      %v1231 = vunpack.c.l.b16 %v1197
      %v1232 = vunpack.c.h.b16 %v1197
      %v1233 = vunpack.c.l.b16 %v1198
      %v1234 = vunpack.c.h.b16 %v1198
      %v1235 = vunpack.c.l.b16 %v1199
      %v1236 = vunpack.c.h.b16 %v1199
      %v1237 = vunpack.c.l.b16 %v1200
      %v1238 = vunpack.c.h.b16 %v1200
      %v1239 = vunpack.c.l.b16 %v1201
      %v1240 = vunpack.c.h.b16 %v1201
      %v1241 = vunpack.c.l.b16 %v1202
      %v1242 = vunpack.c.h.b16 %v1202
      %v1243 = vunpack.c.l.b16 %v1203
      %v1244 = vunpack.c.h.b16 %v1203
      %v1245 = vunpack.c.l.b16 %v1204
      %v1246 = vunpack.c.h.b16 %v1204
      %v1247 = vunpack.c.l.b16 %v1205
      %v1248 = vunpack.c.h.b16 %v1205
      %v1249 = vunpack.c.l.b16 %v1206
      %v1250 = vunpack.c.h.b16 %v1206
      %v1251 = vunpack.c.l.b16 %v1207
      %v1252 = vunpack.c.h.b16 %v1207
      %v1253 = vunpack.c.l.b16 %v1208
      %v1254 = vunpack.c.h.b16 %v1208
      %v1255 = vunpack.c.l.b16 %v1209
      %v1256 = vunpack.c.h.b16 %v1209
      %v1257 = vunpack.c.l.b16 %v1210
      %v1258 = vunpack.c.h.b16 %v1210
      %v1259 = vpack.c.b16 %v1231, %v1227
      %v1260 = vpack.c.b16 %v1232, %v1228
      %v1261 = vpack.c.b16 %v1233, %v1229
      %v1262 = vpack.c.b16 %v1234, %v1230
      %v1263 = vpack.c.b16 %v1239, %v1235
      %v1264 = vpack.c.b16 %v1240, %v1236
      %v1265 = vpack.c.b16 %v1241, %v1237
      %v1266 = vpack.c.b16 %v1242, %v1238
      %v1267 = vpack.c.b16 %v1247, %v1243
      %v1268 = vpack.c.b16 %v1248, %v1244
      %v1269 = vpack.c.b16 %v1249, %v1245
      %v1270 = vpack.c.b16 %v1250, %v1246
      %v1271 = vpack.c.b16 %v1255, %v1251
      %v1272 = vpack.c.b16 %v1256, %v1252
      %v1273 = vpack.c.b16 %v1257, %v1253
      %v1274 = vpack.c.b16 %v1258, %v1254
      %v1292 = vsel %vm513, %v1194, 0
      %1294 = vmatprep.subr.bf16.mxu0 0
      %1295 = vmatpush1.bf16.msra.mxu0 0
      %1296 = vmatprep.subr.bf16.mxu0 0
      %1297 = vmatpush1.bf16.msra.mxu0 0
      %1298 = vmatprep.subr.bf16.mxu0 0
      %1299 = vmatpush1.bf16.msra.mxu0 0
      %1300 = vmatprep.subr.bf16.mxu0 0
      %1301 = vmatpush1.bf16.msra.mxu0 0
      %1302 = vmatprep.subr.bf16.mxu0 %v1272
      %1303 = vmatpush1.bf16.msra.mxu0 %v1271
      %1304 = vmatprep.subr.bf16.mxu0 %v1268
      %1305 = vmatpush1.bf16.msra.mxu0 %v1267
      %1306 = vmatprep.subr.bf16.mxu0 %v1264
      %1307 = vmatpush1.bf16.msra.mxu0 %v1263
      %1308 = vmatprep.subr.bf16.mxu0 %v1260
      %1309 = vmatpush1.bf16.msra.mxu0 %v1259
      %1310 = vmatprep.subr.bf16.mxu0 0
      %1311 = vmatpush2.bf16.msra.mxu0 0
      %1312 = vmatprep.subr.bf16.mxu0 0
      %1313 = vmatpush2.bf16.msra.mxu0 0
      %1314 = vmatprep.subr.bf16.mxu0 0
      %1315 = vmatpush2.bf16.msra.mxu0 0
      %1316 = vmatprep.subr.bf16.mxu0 0
      %1317 = vmatpush2.bf16.msra.mxu0 0
      %1318 = vmatprep.subr.bf16.mxu0 0
      %1319 = vmatpush2.bf16.msra.mxu0 0
      %1320 = vmatprep.subr.bf16.mxu0 0
      %1321 = vmatpush2.bf16.msra.mxu0 0
      %1322 = vmatprep.subr.bf16.mxu0 0
      %1323 = vmatpush2.bf16.msra.mxu0 0
      %1324 = vmatprep.subr.bf16.mxu0 0
      %1325 = vmatpush2.bf16.msra.mxu0 0
      %1326 = vmatprep.mubr.bf16.mxu0 0
      %1327 = vmatmul.mubr.bf16.gmra.mxu0 %v1292
      %v1328 = vpop.f32.mrf.mxu0
      %v1329 = vadd.f32 0.0, %v1328
      %v1330 = vpop.f32.mrf.mxu0
      %v1331 = vadd.f32 0.0, %v1330
      %v1332 = vpop.f32.mrf.mxu0
      %v1333 = vpop.f32.mrf.mxu0
      %1334 = vdwg.mxu0
      %1335 = vmatprep.subr.bf16.mxu0 0
      %1336 = vmatpush1.bf16.msra.mxu0 0
      %1337 = vmatprep.subr.bf16.mxu0 0
      %1338 = vmatpush1.bf16.msra.mxu0 0
      %1339 = vmatprep.subr.bf16.mxu0 0
      %1340 = vmatpush1.bf16.msra.mxu0 0
      %1341 = vmatprep.subr.bf16.mxu0 0
      %1342 = vmatpush1.bf16.msra.mxu0 0
      %1343 = vmatprep.subr.bf16.mxu0 %v1274
      %1344 = vmatpush1.bf16.msra.mxu0 %v1273
      %1345 = vmatprep.subr.bf16.mxu0 %v1270
      %1346 = vmatpush1.bf16.msra.mxu0 %v1269
      %1347 = vmatprep.subr.bf16.mxu0 %v1266
      %1348 = vmatpush1.bf16.msra.mxu0 %v1265
      %1349 = vmatprep.subr.bf16.mxu0 %v1262
      %1350 = vmatpush1.bf16.msra.mxu0 %v1261
      %1351 = vmatprep.subr.bf16.mxu0 0
      %1352 = vmatpush2.bf16.msra.mxu0 0
      %1353 = vmatprep.subr.bf16.mxu0 0
      %1354 = vmatpush2.bf16.msra.mxu0 0
      %1355 = vmatprep.subr.bf16.mxu0 0
      %1356 = vmatpush2.bf16.msra.mxu0 0
      %1357 = vmatprep.subr.bf16.mxu0 0
      %1358 = vmatpush2.bf16.msra.mxu0 0
      %1359 = vmatprep.subr.bf16.mxu0 0
      %1360 = vmatpush2.bf16.msra.mxu0 0
      %1361 = vmatprep.subr.bf16.mxu0 0
      %1362 = vmatpush2.bf16.msra.mxu0 0
      %1363 = vmatprep.subr.bf16.mxu0 0
      %1364 = vmatpush2.bf16.msra.mxu0 0
      %1365 = vmatprep.subr.bf16.mxu0 0
      %1366 = vmatpush2.bf16.msra.mxu0 0
      %1367 = vmatprep.mubr.bf16.mxu0 0
      %1368 = vmatmul.mubr.bf16.gmra.mxu0 %v1292
      %v1369 = vpop.f32.mrf.mxu0
      %v1370 = vadd.f32 0.0, %v1369
      %v1371 = vpop.f32.mrf.mxu0
      %v1372 = vadd.f32 0.0, %v1371
      %v1373 = vpop.f32.mrf.mxu0
      %v1374 = vpop.f32.mrf.mxu0
      %1375 = vdwg.mxu0
      %v1376 = vxor.u32 %v1329, 2147483648
      %v1377 = vxor.u32 %v1331, 2147483648
      %v1378 = vmul.f32 %v1376, 1.442695
      %v1379 = vpow.pop %v1378
      %v1380 = vmul.f32 %v1377, 1.442695
      %v1381 = vpow.pop %v1380
      %v1382 = vadd.f32 %v1379, 1.0
      %v1383 = vadd.f32 %v1381, 1.0
      %v1384 = vrcp.pop %v1382
      %v1385 = vmul.f32 1.0, %v1384
      %v1386 = vrcp.pop %v1383
      %v1387 = vmul.f32 1.0, %v1386
      %v1388 = vmul.f32 %v1329, %v1385
      %v1389 = vmul.f32 %v1331, %v1387
      %v1390 = vmul.f32 %v1388, %v1370
      %v1391 = vmul.f32 %v1389, %v1372
      %v1392 = vpack.c.bf16 %v1390, %v1390
      %v1393 = vpack.c.bf16 %v1391, %v1391
      %v1394 = vld [vmem:[%s497] sm:$0xf]
      %v1395 = vld [vmem:[%s497 + $0x4] sm:$0xf]
      %v1396 = vld [vmem:[%s497 + $0x8] sm:$0xf]
      %v1397 = vld [vmem:[%s497 + $0xc] sm:$0xf]
      %v1398 = vld [vmem:[%s497 + $0x10] sm:$0xf]
      %v1399 = vld [vmem:[%s497 + $0x14] sm:$0xf]
      %v1400 = vld [vmem:[%s497 + $0x18] sm:$0xf]
      %v1401 = vld [vmem:[%s497 + $0x1c] sm:$0xf]
      %v1402 = vld [vmem:[%s497 + $0x20] sm:$0xf]
      %v1403 = vld [vmem:[%s497 + $0x24] sm:$0xf]
      %v1404 = vld [vmem:[%s497 + $0x28] sm:$0xf]
      %v1405 = vld [vmem:[%s497 + $0x2c] sm:$0xf]
      %v1406 = vld [vmem:[%s497 + $0x30] sm:$0xf]
      %v1407 = vld [vmem:[%s497 + $0x34] sm:$0xf]
      %v1408 = vld [vmem:[%s497 + $0x38] sm:$0xf]
      %v1409 = vld [vmem:[%s497 + $0x3c] sm:$0xf]
      %v1410 = vld [vmem:[%s497 + $0x40] sm:$0xf]
      %v1411 = vld [vmem:[%s497 + $0x44] sm:$0xf]
      %v1412 = vld [vmem:[%s497 + $0x48] sm:$0xf]
      %v1413 = vld [vmem:[%s497 + $0x4c] sm:$0xf]
      %v1414 = vld [vmem:[%s497 + $0x50] sm:$0xf]
      %v1415 = vld [vmem:[%s497 + $0x54] sm:$0xf]
      %v1416 = vld [vmem:[%s497 + $0x58] sm:$0xf]
      %v1417 = vld [vmem:[%s497 + $0x5c] sm:$0xf]
      %v1418 = vld [vmem:[%s497 + $0x60] sm:$0xf]
      %v1419 = vld [vmem:[%s497 + $0x64] sm:$0xf]
      %v1420 = vld [vmem:[%s497 + $0x68] sm:$0xf]
      %v1421 = vld [vmem:[%s497 + $0x6c] sm:$0xf]
      %v1422 = vld [vmem:[%s497 + $0x70] sm:$0xf]
      %v1423 = vld [vmem:[%s497 + $0x74] sm:$0xf]
      %v1424 = vld [vmem:[%s497 + $0x78] sm:$0xf]
      %v1425 = vld [vmem:[%s497 + $0x7c] sm:$0xf]
      %v1458 = vunpack.c.l.b16 %v1394
      %v1459 = vunpack.c.l.b16 %v1395
      %v1460 = vunpack.c.l.b16 %v1396
      %v1461 = vunpack.c.l.b16 %v1397
      %v1462 = vunpack.c.l.b16 %v1398
      %v1463 = vunpack.c.l.b16 %v1399
      %v1464 = vunpack.c.l.b16 %v1400
      %v1465 = vunpack.c.l.b16 %v1401
      %v1466 = vunpack.c.l.b16 %v1402
      %v1467 = vunpack.c.l.b16 %v1403
      %v1468 = vunpack.c.l.b16 %v1404
      %v1469 = vunpack.c.l.b16 %v1405
      %v1470 = vunpack.c.l.b16 %v1406
      %v1471 = vunpack.c.l.b16 %v1407
      %v1472 = vunpack.c.l.b16 %v1408
      %v1473 = vunpack.c.l.b16 %v1409
      %v1474 = vunpack.c.l.b16 %v1410
      %v1475 = vunpack.c.l.b16 %v1411
      %v1476 = vunpack.c.l.b16 %v1412
      %v1477 = vunpack.c.l.b16 %v1413
      %v1478 = vunpack.c.l.b16 %v1414
      %v1479 = vunpack.c.l.b16 %v1415
      %v1480 = vunpack.c.l.b16 %v1416
      %v1481 = vunpack.c.l.b16 %v1417
      %v1482 = vunpack.c.l.b16 %v1418
      %v1483 = vunpack.c.l.b16 %v1419
      %v1484 = vunpack.c.l.b16 %v1420
      %v1485 = vunpack.c.l.b16 %v1421
      %v1486 = vunpack.c.l.b16 %v1422
      %v1487 = vunpack.c.l.b16 %v1423
      %v1488 = vunpack.c.l.b16 %v1424
      %v1489 = vunpack.c.l.b16 %v1425
      %v1490 = vpack.c.b16 %v1459, %v1458
      %v1491 = vpack.c.b16 %v1461, %v1460
      %v1492 = vpack.c.b16 %v1463, %v1462
      %v1493 = vpack.c.b16 %v1465, %v1464
      %v1494 = vpack.c.b16 %v1467, %v1466
      %v1495 = vpack.c.b16 %v1469, %v1468
      %v1496 = vpack.c.b16 %v1471, %v1470
      %v1497 = vpack.c.b16 %v1473, %v1472
      %v1498 = vpack.c.b16 %v1475, %v1474
      %v1499 = vpack.c.b16 %v1477, %v1476
      %v1500 = vpack.c.b16 %v1479, %v1478
      %v1501 = vpack.c.b16 %v1481, %v1480
      %v1502 = vpack.c.b16 %v1483, %v1482
      %v1503 = vpack.c.b16 %v1485, %v1484
      %v1504 = vpack.c.b16 %v1487, %v1486
      %v1505 = vpack.c.b16 %v1489, %v1488
      %1522 = vmatprep.subr.bf16.mxu0 0
      %1523 = vmatpush1.bf16.msra.mxu0 %v1497
      %1524 = vmatprep.subr.bf16.mxu0 0
      %1525 = vmatpush1.bf16.msra.mxu0 %v1496
      %1526 = vmatprep.subr.bf16.mxu0 0
      %1527 = vmatpush1.bf16.msra.mxu0 %v1495
      %1528 = vmatprep.subr.bf16.mxu0 0
      %1529 = vmatpush1.bf16.msra.mxu0 %v1494
      %1530 = vmatprep.subr.bf16.mxu0 0
      %1531 = vmatpush1.bf16.msra.mxu0 %v1493
      %1532 = vmatprep.subr.bf16.mxu0 0
      %1533 = vmatpush1.bf16.msra.mxu0 %v1492
      %1534 = vmatprep.subr.bf16.mxu0 0
      %1535 = vmatpush1.bf16.msra.mxu0 %v1491
      %1536 = vmatprep.subr.bf16.mxu0 0
      %1537 = vmatpush1.bf16.msra.mxu0 %v1490
      %1538 = vmatprep.subr.bf16.mxu0 0
      %1539 = vmatpush2.bf16.msra.mxu0 %v1505
      %1540 = vmatprep.subr.bf16.mxu0 0
      %1541 = vmatpush2.bf16.msra.mxu0 %v1504
      %1542 = vmatprep.subr.bf16.mxu0 0
      %1543 = vmatpush2.bf16.msra.mxu0 %v1503
      %1544 = vmatprep.subr.bf16.mxu0 0
      %1545 = vmatpush2.bf16.msra.mxu0 %v1502
      %1546 = vmatprep.subr.bf16.mxu0 0
      %1547 = vmatpush2.bf16.msra.mxu0 %v1501
      %1548 = vmatprep.subr.bf16.mxu0 0
      %1549 = vmatpush2.bf16.msra.mxu0 %v1500
      %1550 = vmatprep.subr.bf16.mxu0 0
      %1551 = vmatpush2.bf16.msra.mxu0 %v1499
      %1552 = vmatprep.subr.bf16.mxu0 0
      %1553 = vmatpush2.bf16.msra.mxu0 %v1498
      %1554 = vmatprep.mubr.bf16.mxu0 %v1393
      %1555 = vmatmul.mubr.bf16.gmra.mxu0 %v1392
      %v1556 = vpop.f32.mrf.mxu0
      %v1557 = vadd.f32 0.0, %v1556
      %v1558 = vpop.f32.mrf.mxu0
      %v1559 = vpop.f32.mrf.mxu0
      %v1560 = vpop.f32.mrf.mxu0
      %1561 = vdwg.mxu0
      %v1562 = vadd.f32 %v1177, %v1557
      %1563 = vst.msk [vmem:[#allocation2] sm:$0xff] %vm513, %v1562
      %p1564 = scmp.eq.s32.totalorder %s27, 1
      // Predicated region
      $region69: #{fwd.1} parent=63 // pred_check
        %p1565 = pneg %p1564
      $region70: #{fwd.1} parent=63 // pred_check_branch
        %1567 = sbr.rel (%p1565) target = $region72
      $region71: #{fwd.1} parent=63 // pred_region
        %v1568 = vld [vmem:[%s9] sm:$0x1]
        %v1569 = vmul.f32 %v1562, %v1562
        %v1570 = vsel %vm513, %v1569, 0.0
        %1571 = vadd.xlane.f32.xlu0 %v1570
        %v1572 = vpop.xlane.xlu0 %1571
        %v1573 = vmul.f32 %v1572, %v517
        %v1574 = vadd.f32 %v1573, 1e-05
        %v1575 = vrsqrt.pop %v1574
        %v1576 = vmul.f32 %v1562, %v1575
        %v1578 = vlaneseq
        %v1579 = vshrl.u32 %v1578, 7
        %v1580 = vsub.s32 0, %v1579
        %v1581 = vrot.slane %v1568, %v1580
        %v1583 = vmul.f32 %v1576, %v1581
        %v1584 = vpack.c.bf16 %v1583, %v1583
        %v1585 = vld [vmem:[%s10] sm:$0xf]
        %v1586 = vld [vmem:[%s10 + $0x4] sm:$0xf]
        %v1587 = vld [vmem:[%s10 + $0x8] sm:$0xf]
        %v1588 = vld [vmem:[%s10 + $0xc] sm:$0xf]
        %v1589 = vld [vmem:[%s10 + $0x10] sm:$0xf]
        %v1590 = vld [vmem:[%s10 + $0x14] sm:$0xf]
        %v1591 = vld [vmem:[%s10 + $0x18] sm:$0xf]
        %v1592 = vld [vmem:[%s10 + $0x1c] sm:$0xf]
        %v1601 = vunpack.c.l.b16 %v1585
        %v1602 = vunpack.c.l.b16 %v1586
        %v1603 = vunpack.c.l.b16 %v1587
        %v1604 = vunpack.c.l.b16 %v1588
        %v1605 = vunpack.c.l.b16 %v1589
        %v1606 = vunpack.c.l.b16 %v1590
        %v1607 = vunpack.c.l.b16 %v1591
        %v1608 = vunpack.c.l.b16 %v1592
        %v1609 = vpack.c.b16 %v1602, %v1601
        %v1610 = vpack.c.b16 %v1604, %v1603
        %v1611 = vpack.c.b16 %v1606, %v1605
        %v1612 = vpack.c.b16 %v1608, %v1607
        %v1618 = vsel %vm513, %v1584, 0
        %1620 = vmatprep.subr.bf16.mxu0 0
        %1621 = vmatpush1.bf16.msra.mxu0 0
        %1622 = vmatprep.subr.bf16.mxu0 0
        %1623 = vmatpush1.bf16.msra.mxu0 0
        %1624 = vmatprep.subr.bf16.mxu0 0
        %1625 = vmatpush1.bf16.msra.mxu0 0
        %1626 = vmatprep.subr.bf16.mxu0 0
        %1627 = vmatpush1.bf16.msra.mxu0 0
        %1628 = vmatprep.subr.bf16.mxu0 0
        %1629 = vmatpush1.bf16.msra.mxu0 %v1612
        %1630 = vmatprep.subr.bf16.mxu0 0
        %1631 = vmatpush1.bf16.msra.mxu0 %v1611
        %1632 = vmatprep.subr.bf16.mxu0 0
        %1633 = vmatpush1.bf16.msra.mxu0 %v1610
        %1634 = vmatprep.subr.bf16.mxu0 0
        %1635 = vmatpush1.bf16.msra.mxu0 %v1609
        %1636 = vmatprep.subr.bf16.mxu0 0
        %1637 = vmatpush2.bf16.msra.mxu0 0
        %1638 = vmatprep.subr.bf16.mxu0 0
        %1639 = vmatpush2.bf16.msra.mxu0 0
        %1640 = vmatprep.subr.bf16.mxu0 0
        %1641 = vmatpush2.bf16.msra.mxu0 0
        %1642 = vmatprep.subr.bf16.mxu0 0
        %1643 = vmatpush2.bf16.msra.mxu0 0
        %1644 = vmatprep.subr.bf16.mxu0 0
        %1645 = vmatpush2.bf16.msra.mxu0 0
        %1646 = vmatprep.subr.bf16.mxu0 0
        %1647 = vmatpush2.bf16.msra.mxu0 0
        %1648 = vmatprep.subr.bf16.mxu0 0
        %1649 = vmatpush2.bf16.msra.mxu0 0
        %1650 = vmatprep.subr.bf16.mxu0 0
        %1651 = vmatpush2.bf16.msra.mxu0 0
        %1652 = vmatprep.mubr.bf16.mxu0 0
        %1653 = vmatmul.mubr.bf16.gmra.mxu0 %v1618
        %v1654 = vpop.f32.mrf.mxu0
        %v1655 = vadd.f32 0.0, %v1654
        %v1656 = vpop.f32.mrf.mxu0
        %v1657 = vpop.f32.mrf.mxu0
        %v1658 = vpop.f32.mrf.mxu0
        %1659 = vdwg.mxu0
        %1660 = vst [vmem:[%s501] sm:$0xff] %v1655
      $region72: #{fwd.1} parent=63 // pred_fallthru
        _
      %p1661 = scmp.lt.s32.totalorder %s26, 1
      %s1662 = scalar_select %p1661, %s26, 1
      %s1663 = smul.addr %s1662, 8
      %s1664 = scalar_lea.vmem %s11, %s1663
      // Predicated region
      $region73: #{fwd.1} parent=63 // pred_check
        %p1665 = pneg %p318
      $region74: #{fwd.1} parent=63 // pred_check_branch
        %1667 = sbr.rel (%p1665) target = $region76
      $region75: #{fwd.1} parent=63 // pred_region
        _
      $region76: #{fwd.1} parent=63 // pred_fallthru
        _
    $region64: #{fwd.1} parent=5 // pred_fallthru
      _
    %p1668 = scmp.le.s32.totalorder 2, %s17
    // Predicated region
    $region77: #{fwd.1} parent=5 // pred_check
      %p1669 = pneg %p1668
    $region78: #{fwd.1} parent=5 // pred_check_branch
      %1671 = sbr.rel (%p1669) target = $region80
    $region79: #{fwd.1} parent=5 // pred_region
      %s1672 = ssub.s32 %s17, 2
      // Predicated region
      $region81: #{fwd.1} parent=79 // pred_check
        %p1673 = pneg %p324
      $region82: #{fwd.1} parent=79 // pred_check_branch
        %1675 = sbr.rel (%p1673) target = $region84
      $region83: #{fwd.1} parent=79 // pred_region
        %p1676 = scmp.lt.s32.totalorder %s28, 1
        %s1677 = scalar_select %p1676, %s28, 1
        %s1678 = smul.addr %s1677, 8
        %s1679 = scalar_lea.vmem %s11, %s1678
      $region84: #{fwd.1} parent=79 // pred_fallthru
        _
    $region80: #{fwd.1} parent=5 // pred_fallthru
      _
  $region6: #{fwd.1} parent=0 // loop_footer
    %s21 = sadd.s32 1, %s17
  $region7: #{fwd.1} parent=0 // loop_footer_branch
    %16 = sbr.rel target = $region3
  $region8: #{fwd.1} parent=0 // loop_exit
    _

</llo_original>
